<compile_context>
chip_gen: v7x
topology: tpu7x:2x2x1
jax: 0.10.0
libtpu: 0.0.40
codegen_flags: <defaults>
</compile_context>

<pallas_src>
import jax
import jax.numpy as jnp
from jax.experimental import pallas as pl
from jax.experimental.pallas import tpu as pltpu


IN_DIM = 1024
HID_DIM = 128
OUT_DIM = 1


def _round_up(n, m):
    return (n + m - 1) // m * m


def _cdiv(a, b):
    return (a + b - 1) // b


def _discriminator_kernel(x_ref, w1_ref, b1_ref, w2_ref, b2_ref, o_ref):
    # Cast the x tile to the weight dtype (bf16) on the VPU; a no-op if x
    # already arrives in bf16.  f32 accumulation on the MXU.
    x = x_ref[...].astype(w1_ref.dtype)
    h = jnp.dot(x, w1_ref[...], preferred_element_type=jnp.float32)   # (tb, 128)
    h = jnp.maximum(h + b1_ref[...], 0.0)                             # bias + ReLU (VPU)
    # Layer 2 (out_features == 1): contract the hidden dim of w2_row (1, 128)
    # against the hidden dim of h (tb, 128) -> lane-dense (1, tb) row, stored
    # with full-width vst (no masked single-lane column stores).
    # NOTE(perf review item): this dot_general may hide an XLU relayout of h.
    # At (tb, 128) f32 that is at most a few hundred ns per tile and stays
    # under the per-tile x DMA time on v5e/v6e/v7x, so the proven-to-lower form
    # is kept.  If a Mosaic dump (pl.lower_as_mlir) ever shows it exposed,
    # switch to `col = jnp.dot(h, w2_col); logits = col.T`, which avoids
    # transposing the full h at the cost of one narrow (tb,1)->(1,tb) relayout.
    logits = jax.lax.dot_general(
        w2_ref[...], h,
        dimension_numbers=(((1,), (1,)), ((), ())),
        preferred_element_type=jnp.float32)          # (1, tb)
    logits = logits + b2_ref[0]                      # scalar bias from SMEM
    o_ref[...] = jax.nn.sigmoid(logits).astype(o_ref.dtype)


def prepare_params(w1, b1, w2, b2, *, compute_dtype=jnp.bfloat16):
    """One-time parameter prep (do NOT call per forward): cast w1 to bf16 and
    reshape the small tensors into the layouts the kernel expects."""
    w1_k = jnp.asarray(w1, jnp.float32).astype(compute_dtype)       # (1024, 128)
    b1_k = jnp.asarray(b1, jnp.float32).reshape(1, HID_DIM)         # (1, 128)
    w2_k = jnp.asarray(w2, jnp.float32).reshape(1, HID_DIM)         # (1, 128) row
    b2_k = jnp.asarray(b2, jnp.float32).reshape(1)                  # (1,)  SMEM
    return w1_k, b1_k, w2_k, b2_k


def discriminator_forward(x, w1_k, b1_k, w2_k, b2_k, *, batch_tile=2048):
    """x: (B, 1024) f32 or bf16 -> (B, 1) float32 sigmoid probabilities.

    Params must come from `prepare_params` (w1 already bf16, rest reshaped)."""
    B, D = x.shape
    assert D == IN_DIM
    assert w1_k.shape == (IN_DIM, HID_DIM)

    # Tile policy:
    #  * multiple of 128 (lane-dense output blocks),
    #  * capped so num_tiles >= 2 (both v7x TensorCores get work),
    #  * capped at 4096 so the VMEM budget stays well under physical VMEM.
    batch_tile = max(128, min(int(batch_tile), 4096,
                              _round_up(_cdiv(B, 2), 128)))
    num_tiles = _cdiv(B, batch_tile)          # last x block may be partial
    b_out = _round_up(B, 128)                 # only the OUTPUT is padded

    # VMEM budget: double-buffered x tile + w1 + in-kernel bf16 copy of the x
    # tile + f32 h temps + slack.  Needed on v5e (16 MiB scoped default).
    x_tile_bytes = batch_tile * IN_DIM * x.dtype.itemsize
    vmem_bytes = (2 * x_tile_bytes
                  + 2 * IN_DIM * HID_DIM * w1_k.dtype.itemsize
                  + batch_tile * IN_DIM * 2        # bf16 copy of the x tile
                  + 2 * batch_tile * HID_DIM * 4   # h and post-ReLU temps
                  + (4 << 20))                     # headroom
    vmem_limit = int(min(max(vmem_bytes, 16 << 20), 56 << 20))

    cost = pl.CostEstimate(
        flops=2 * B * IN_DIM * HID_DIM + 2 * B * HID_DIM * OUT_DIM,
        transcendentals=B,
        bytes_accessed=int(x.size * x.dtype.itemsize
                           + IN_DIM * HID_DIM * w1_k.dtype.itemsize
                           + (2 * HID_DIM + 1) * 4
                           + b_out * 4),
    )

    out_row = pl.pallas_call(
        _discriminator_kernel,
        out_shape=jax.ShapeDtypeStruct((1, b_out), jnp.float32),
        grid_spec=pltpu.PrefetchScalarGridSpec(
            num_scalar_prefetch=0,
            grid=(num_tiles,),
            in_specs=[
                # x: tiled over the batch; the last block may be partial, its
                # garbage tail rows only produce outputs that get sliced off.
                pl.BlockSpec((batch_tile, IN_DIM), lambda i: (i, 0)),
                # grid-invariant weights / biases
                pl.BlockSpec((IN_DIM, HID_DIM), lambda i: (0, 0)),
                pl.BlockSpec((1, HID_DIM), lambda i: (0, 0)),
                pl.BlockSpec((1, HID_DIM), lambda i: (0, 0)),
                # b2 scalar in SMEM
                pl.BlockSpec(memory_space=pltpu.MemorySpace.SMEM),
            ],
            # lane-dense output row: batch along the 128-wide lane axis
            out_specs=pl.BlockSpec((1, batch_tile), lambda i: (0, i)),
        ),
        compiler_params=pltpu.CompilerParams(
            dimension_semantics=("parallel",),
            vmem_limit_bytes=vmem_limit,
        ),
        cost_estimate=cost,
    )(x, w1_k, b1_k, w2_k, b2_k)

    return out_row[0, :B].reshape(B, OUT_DIM)


def init_params(key):
    """PyTorch nn.Linear-style init: U(-1/sqrt(fan_in), 1/sqrt(fan_in))."""
    k1, k2, k3, k4 = jax.random.split(key, 4)
    bound1 = 1.0 / jnp.sqrt(jnp.float32(IN_DIM))
    bound2 = 1.0 / jnp.sqrt(jnp.float32(HID_DIM))
    # stored as (in, out) so the kernel does x @ w  (PyTorch stores (out, in))
    w1 = jax.random.uniform(k1, (IN_DIM, HID_DIM), jnp.float32, -bound1, bound1)
    b1 = jax.random.uniform(k2, (1, HID_DIM), jnp.float32, -bound1, bound1)
    w2 = jax.random.uniform(k3, (HID_DIM, OUT_DIM), jnp.float32, -bound2, bound2)
    b2 = jax.random.uniform(k4, (1, OUT_DIM), jnp.float32, -bound2, bound2)
    return w1, b1, w2, b2


def reference_forward(x, w1, b1, w2, b2):
    h = jnp.maximum(x @ w1 + b1, 0.0)
    return jax.nn.sigmoid(h @ w2 + b2)


if __name__ == "__main__":
    key = jax.random.PRNGKey(0)
    kx, kp = jax.random.split(key)

    B = 300  # deliberately not 128-aligned: exercises the partial-tile path
    x = jax.random.normal(kx, (B, IN_DIM), dtype=jnp.float32)
    w1, b1, w2, b2 = init_params(kp)
    params = prepare_params(w1, b1, w2, b2)   # one-time prep, not per call

    ref = reference_forward(x, w1, b1, w2, b2)

    # f32 x: cast to bf16 happens inside the kernel (single HBM pass over x).
    out = jax.block_until_ready(discriminator_forward(x, *params))
    assert out.shape == (B, OUT_DIM)
    err = float(jnp.max(jnp.abs(out - ref)))
    assert err < 5e-3, f"max abs err = {err}"      # bf16 x/w1 on the MXU

    # bf16 x produced upstream: same kernel, half the HBM read traffic.
    out_bf = jax.block_until_ready(
        discriminator_forward(x.astype(jnp.bfloat16), *params))
    err_bf = float(jnp.max(jnp.abs(out_bf - ref)))
    assert err_bf < 5e-3, f"max abs err (bf16 x) = {err_bf}"

    # Small tile: multi-step grid (3 steps) with a partial last tile.
    out_small = jax.block_until_ready(
        discriminator_forward(x, *params, batch_tile=128))
    err_small = float(jnp.max(jnp.abs(out_small - ref)))
    assert err_small < 5e-3, f"max abs err (tiled) = {err_small}"

    print("KERNEL_OK")
</pallas_src>

<mosaic_0001>
module attributes {stable_mosaic.version = 11 : i64} {
  func.func @_discriminator_kernel(%arg0: i32, %arg1: memref<256x1024xf32, #tpu.memory_space<vmem>>, %arg2: memref<1024x128xbf16, #tpu.memory_space<vmem>>, %arg3: memref<1x128xf32, #tpu.memory_space<vmem>>, %arg4: memref<1x128xf32, #tpu.memory_space<vmem>>, %arg5: memref<1xf32, #tpu.memory_space<smem>>, %arg6: memref<1x256xf32, #tpu.memory_space<vmem>>) attributes {dimension_semantics = [#tpu.dimension_semantics<parallel>], iteration_bounds = array<i64: 2>, scalar_prefetch = 0 : i64, scratch_operands = 0 : i64, tpu.core_type = #tpu.core_type<tc>, window_params = [{transform_indices = @transform_0, window_bounds = array<i64: 256, 1024>}, {pipeline_mode = #tpu.pipeline_mode<synchronous>, transform_indices = @transform_1, window_bounds = array<i64: 1024, 128>}, {pipeline_mode = #tpu.pipeline_mode<synchronous>, transform_indices = @transform_2, window_bounds = array<i64: 1, 128>}, {pipeline_mode = #tpu.pipeline_mode<synchronous>, transform_indices = @transform_3, window_bounds = array<i64: 1, 128>}, {transform_indices = @transform_4, window_bounds = array<i64: 1>}, {transform_indices = @transform_5, window_bounds = array<i64: 1, 256>}]} {
    %c0 = arith.constant 0 : index
    %c0_0 = arith.constant 0 : index
    %0 = vector.load %arg1[%c0, %c0_0] : memref<256x1024xf32, #tpu.memory_space<vmem>>, vector<256x1024xf32>
    %1 = arith.truncf %0 : vector<256x1024xf32> to vector<256x1024xbf16>
    %c0_1 = arith.constant 0 : index
    %c0_2 = arith.constant 0 : index
    %2 = vector.load %arg2[%c0_1, %c0_2] : memref<1024x128xbf16, #tpu.memory_space<vmem>>, vector<1024x128xbf16>
    %cst = arith.constant dense<0.000000e+00> : vector<256x128xf32>
    %3 = tpu.matmul %1, %2, %cst {dimension_numbers = #tpu.dot_dimension_numbers<[1], [0], [0], [1], [0, 0, 1, 1], [], []>} : vector<256x1024xbf16>, vector<1024x128xbf16>, vector<256x128xf32> -> vector<256x128xf32>
    %c0_3 = arith.constant 0 : index
    %c0_4 = arith.constant 0 : index
    %4 = vector.load %arg3[%c0_3, %c0_4] : memref<1x128xf32, #tpu.memory_space<vmem>>, vector<1x128xf32>
    %5 = vector.broadcast %4 : vector<1x128xf32> to vector<256x128xf32>
    %6 = arith.addf %3, %5 : vector<256x128xf32>
    %cst_5 = arith.constant 0.000000e+00 : f32
    %7 = vector.broadcast %cst_5 : f32 to vector<256x128xf32>
    %8 = arith.maximumf %6, %7 : vector<256x128xf32>
    %c0_6 = arith.constant 0 : index
    %c0_7 = arith.constant 0 : index
    %9 = vector.load %arg4[%c0_6, %c0_7] : memref<1x128xf32, #tpu.memory_space<vmem>>, vector<1x128xf32>
    %cst_8 = arith.constant dense<0.000000e+00> : vector<1x256xf32>
    %10 = tpu.matmul %9, %8, %cst_8 {dimension_numbers = #tpu.dot_dimension_numbers<[1], [1], [0], [0], [0, 0, 1, 0], [], []>} : vector<1x128xf32>, vector<256x128xf32>, vector<1x256xf32> -> vector<1x256xf32>
    %c0_9 = arith.constant 0 : index
    %11 = memref.load %arg5[%c0_9] : memref<1xf32, #tpu.memory_space<smem>>
    %12 = vector.broadcast %11 : f32 to vector<1x256xf32>
    %13 = arith.addf %10, %12 : vector<1x256xf32>
    %14 = arith.negf %13 : vector<1x256xf32>
    %15 = math.exp %14 : vector<1x256xf32>
    %cst_10 = arith.constant 1.000000e+00 : f32
    %16 = vector.broadcast %cst_10 : f32 to vector<1x256xf32>
    %17 = arith.addf %16, %15 : vector<1x256xf32>
    %18 = arith.divf %16, %17 : vector<1x256xf32>
    %c0_11 = arith.constant 0 : index
    %c0_12 = arith.constant 0 : index
    %19 = vector.load %arg6[%c0_11, %c0_12] : memref<1x256xf32, #tpu.memory_space<vmem>>, vector<1x256xf32>
    tpu.vector_store %arg6[%c0_11, %c0_12], %18 {strides = array<i32>} : memref<1x256xf32, #tpu.memory_space<vmem>>, vector<1x256xf32>,
    return
  }
  func.func @transform_0(%arg0: i32) -> (i32, i32) {
    %c0_i32 = arith.constant 0 : i32
    %c0_i32_0 = arith.constant 0 : i32
    return %arg0, %c0_i32 : i32, i32
  }
  func.func @transform_1(%arg0: i32) -> (i32, i32) {
    %c0_i32 = arith.constant 0 : i32
    %c0_i32_0 = arith.constant 0 : i32
    %c0_i32_1 = arith.constant 0 : i32
    return %c0_i32, %c0_i32_0 : i32, i32
  }
  func.func @transform_2(%arg0: i32) -> (i32, i32) {
    %c0_i32 = arith.constant 0 : i32
    %c0_i32_0 = arith.constant 0 : i32
    %c0_i32_1 = arith.constant 0 : i32
    return %c0_i32, %c0_i32_0 : i32, i32
  }
  func.func @transform_3(%arg0: i32) -> (i32, i32) {
    %c0_i32 = arith.constant 0 : i32
    %c0_i32_0 = arith.constant 0 : i32
    %c0_i32_1 = arith.constant 0 : i32
    return %c0_i32, %c0_i32_0 : i32, i32
  }
  func.func @transform_4(%arg0: i32) -> i32 {
    %c0_i32 = arith.constant 0 : i32
    %c0_i32_0 = arith.constant 0 : i32
    return %c0_i32 : i32
  }
  func.func @transform_5(%arg0: i32) -> (i32, i32) {
    %c0_i32 = arith.constant 0 : i32
    %c0_i32_0 = arith.constant 0 : i32
    return %c0_i32, %arg0 : i32, i32
  }
}

</mosaic_0001>

<llo_original>
// kernel: tpu_custom_call.1
$region0: #{tpu_custom_call.1}
  #allocation0 [shape = 'u32[]', space=smem, size = 0x4, offset = 0x4, fixed_abs, tag = 'smem constant byte address 0x4 - core index']
  #allocation1 [shape = 'u32[144,128]{1,0:T(1,128)}', space=vmem, size = 0x12000, scoped, tag = 'internal scratch']
  #allocation2 [shape = 'f32[1]{0:T(128)S(6)}', space=smem, size = 0x200, scoped, tag = 'scoped memory for tpu_custom_call.1']
  %s0 = inlined_call_operand.hbm [shape: f32[300,1024], index: 0, kind: input, shape index: {}]
  %s1 = inlined_call_operand.hbm [shape: bf16[1024,128], index: 1, kind: input, shape index: {}]
  %s2 = inlined_call_operand.hbm [shape: f32[1,128], index: 2, kind: input, shape index: {}]
  %s3 = inlined_call_operand.hbm [shape: f32[1,128], index: 3, kind: input, shape index: {}]
  %s4 = inlined_call_operand.<no memory space> [shape: f32[1], index: 4, kind: input, shape index: {}]
  %s5 = inlined_call_operand.hbm [shape: f32[1,384], index: 5, kind: output, shape index: {}]
  %s6 = sld [smem:[#allocation0]]
  $region69: #{tpu_custom_call.1} parent=0
    _
  %s8 = ssub.s32 1, %s6
  %s9 = scalar_select 0, %s8, %s6
  %10 = sst [smem:[#allocation2]] %s4
  $region1: #{tpu_custom_call.1} parent=0
    #allocation3 [shape = 'u8[2097152]{0}', space=vmem, size = 0x200000, scoped, tag = 'input window, operand 0']
    #allocation4 [shape = 's32[2]{0}', space=sflag, size = 0x8, scoped, tag = 'scoped memory for tpu_custom_call.1']
    #allocation5 [shape = 's32[2]{0}', space=sflag, size = 0x8, scoped, tag = 'scoped memory for tpu_custom_call.1']
    #allocation6 [shape = 'u8[262144]{0}', space=vmem, size = 0x40000, scoped, tag = 'input window, operand 1, single buffered']
    #allocation7 [shape = 's32[1]{0}', space=sflag, size = 0x4, scoped, tag = 'scoped memory for tpu_custom_call.1']
    #allocation8 [shape = 'u8[512]{0}', space=vmem, size = 0x400, scoped, tag = 'input window, operand 2, single buffered']
    #allocation9 [shape = 'u8[512]{0}', space=vmem, size = 0x400, scoped, tag = 'input window, operand 3, single buffered']
    #allocation10 [shape = 's32[1]{0}', space=sflag, size = 0x4, scoped, tag = 'scoped memory for tpu_custom_call.1']
    #allocation11 [shape = 'u8[2048]{0}', space=vmem, size = 0x800, scoped, tag = 'output window, operand 0']
    %11 = vsyncpa [#allocation4], 0
    %s12 = scalar_lea.sflag [#allocation4], 1
    %13 = vsyncpa %s12, 0
    %14 = vsyncpa [#allocation7], 0
    %15 = vsyncpa [#allocation10], 0
    %16 = vsyncpa [#allocation5], 0
    %s17 = scalar_lea.sflag [#allocation5], 1
    %18 = vsyncpa %s17, 0
    loop: start=0, step=1, limit=4
    $region2: #{tpu_custom_call.1} parent=1 // loop_pre_header
      _
    $region3: #{tpu_custom_call.1} parent=1 // loop_header
      %s20 = sphi 0, %s24
      %p21 = scmp.ge.s32.totalorder %s20, 4
      %s30 = sphi 0, %s32
      %s33 = sphi 0, %s30
      %s34 = sphi 0, %s33
      %s50 = sphi 0, %s34
      %s54 = sphi 0, %s54
      %s56 = sphi 0, %s54
      %s57 = sphi 0, %s56
      %s71 = sphi 0, %s57
      %s75 = sphi 0, %s75
      %s77 = sphi 0, %s75
      %s78 = sphi 0, %s77
      %s92 = sphi 0, %s78
      %s96 = sphi 0, %s96
      %s98 = sphi 0, %s96
      %s99 = sphi 0, %s98
      %s113 = sphi 0, %s99
      %s117 = sphi 0, %s117
      %s119 = sphi 0, %s117
      %s120 = sphi 0, %s119
      %s134 = sphi 0, %s120
      %s140 = sphi 0, %s142
      %s143 = sphi 0, %s140
      %s144 = sphi 0, %s143
      %s160 = sphi 0, %s144
    $region4: #{tpu_custom_call.1} parent=1 // loop_header_branch
      %23 = sbr.rel (%p21) target = $region8
    $region5: #{tpu_custom_call.1} parent=1 // loop_body
      %s25 = ssub.s32 %s20, 1
      %s26 = ssub.s32 %s20, 2
      %s27 = sadd.s32 %s20, 1
      %s28 = ssub.s32 %s20, %s27
      %p29 = scmp.eq.s32.totalorder %s28, 0
      %s31 = sadd.s32 %s30, 1
      %s32 = scalar_select %p29, %s30, %s31
      %p35 = pneg %p29
      %p36 = scmp.eq.s32.totalorder %s20, 1
      %p37 = por %p35, %p36
      %p38 = scmp.ne.s32.totalorder %s30, %s33
      %p39 = scmp.eq.s32.totalorder %s20, 0
      %p40 = por %p38, %p39
      %p41 = scmp.ne.s32.totalorder %s30, %s33
      %p42 = scmp.eq.s32.totalorder %s25, 1
      %p43 = por %p41, %p42
      %p44 = scmp.ne.s32.totalorder %s33, %s34
      %p45 = scmp.eq.s32.totalorder %s25, 0
      %p46 = por %p44, %p45
      %p47 = scmp.ne.s32.totalorder %s33, %s34
      %p48 = scmp.eq.s32.totalorder %s26, 1
      %p49 = por %p47, %p48
      %p51 = scmp.ne.s32.totalorder %s34, %s50
      %p52 = scmp.eq.s32.totalorder %s26, 0
      %p53 = por %p51, %p52
      %s55 = sadd.s32 %s54, 1
      %p58 = scmp.eq.s32.totalorder %s20, 1
      %p59 = scmp.ne.s32.totalorder %s54, %s56
      %p60 = scmp.eq.s32.totalorder %s20, 0
      %p61 = por %p59, %p60
      %p62 = scmp.ne.s32.totalorder %s54, %s56
      %p63 = scmp.eq.s32.totalorder %s25, 1
      %p64 = por %p62, %p63
      %p65 = scmp.ne.s32.totalorder %s56, %s57
      %p66 = scmp.eq.s32.totalorder %s25, 0
      %p67 = por %p65, %p66
      %p68 = scmp.ne.s32.totalorder %s56, %s57
      %p69 = scmp.eq.s32.totalorder %s26, 1
      %p70 = por %p68, %p69
      %p72 = scmp.ne.s32.totalorder %s57, %s71
      %p73 = scmp.eq.s32.totalorder %s26, 0
      %p74 = por %p72, %p73
      %s76 = sadd.s32 %s75, 1
      %p79 = scmp.eq.s32.totalorder %s20, 1
      %p80 = scmp.ne.s32.totalorder %s75, %s77
      %p81 = scmp.eq.s32.totalorder %s20, 0
      %p82 = por %p80, %p81
      %p83 = scmp.ne.s32.totalorder %s75, %s77
      %p84 = scmp.eq.s32.totalorder %s25, 1
      %p85 = por %p83, %p84
      %p86 = scmp.ne.s32.totalorder %s77, %s78
      %p87 = scmp.eq.s32.totalorder %s25, 0
      %p88 = por %p86, %p87
      %p89 = scmp.ne.s32.totalorder %s77, %s78
      %p90 = scmp.eq.s32.totalorder %s26, 1
      %p91 = por %p89, %p90
      %p93 = scmp.ne.s32.totalorder %s78, %s92
      %p94 = scmp.eq.s32.totalorder %s26, 0
      %p95 = por %p93, %p94
      %s97 = sadd.s32 %s96, 1
      %p100 = scmp.eq.s32.totalorder %s20, 1
      %p101 = scmp.ne.s32.totalorder %s96, %s98
      %p102 = scmp.eq.s32.totalorder %s20, 0
      %p103 = por %p101, %p102
      %p104 = scmp.ne.s32.totalorder %s96, %s98
      %p105 = scmp.eq.s32.totalorder %s25, 1
      %p106 = por %p104, %p105
      %p107 = scmp.ne.s32.totalorder %s98, %s99
      %p108 = scmp.eq.s32.totalorder %s25, 0
      %p109 = por %p107, %p108
      %p110 = scmp.ne.s32.totalorder %s98, %s99
      %p111 = scmp.eq.s32.totalorder %s26, 1
      %p112 = por %p110, %p111
      %p114 = scmp.ne.s32.totalorder %s99, %s113
      %p115 = scmp.eq.s32.totalorder %s26, 0
      %p116 = por %p114, %p115
      %s118 = sadd.s32 %s117, 1
      %p121 = scmp.eq.s32.totalorder %s20, 1
      %p122 = scmp.ne.s32.totalorder %s117, %s119
      %p123 = scmp.eq.s32.totalorder %s20, 0
      %p124 = por %p122, %p123
      %p125 = scmp.ne.s32.totalorder %s117, %s119
      %p126 = scmp.eq.s32.totalorder %s25, 1
      %p127 = por %p125, %p126
      %p128 = scmp.ne.s32.totalorder %s119, %s120
      %p129 = scmp.eq.s32.totalorder %s25, 0
      %p130 = por %p128, %p129
      %p131 = scmp.ne.s32.totalorder %s119, %s120
      %p132 = scmp.eq.s32.totalorder %s26, 1
      %p133 = por %p131, %p132
      %p135 = scmp.ne.s32.totalorder %s120, %s134
      %p136 = scmp.eq.s32.totalorder %s26, 0
      %p137 = por %p135, %p136
      %s138 = ssub.s32 %s20, %s27
      %p139 = scmp.eq.s32.totalorder %s138, 0
      %s141 = sadd.s32 %s140, 1
      %s142 = scalar_select %p139, %s140, %s141
      %p145 = pneg %p139
      %p146 = scmp.eq.s32.totalorder %s20, 1
      %p147 = por %p145, %p146
      %p148 = scmp.ne.s32.totalorder %s140, %s143
      %p149 = scmp.eq.s32.totalorder %s20, 0
      %p150 = por %p148, %p149
      %p151 = scmp.ne.s32.totalorder %s140, %s143
      %p152 = scmp.eq.s32.totalorder %s25, 1
      %p153 = por %p151, %p152
      %p154 = scmp.ne.s32.totalorder %s143, %s144
      %p155 = scmp.eq.s32.totalorder %s25, 0
      %p156 = por %p154, %p155
      %p157 = scmp.ne.s32.totalorder %s143, %s144
      %p158 = scmp.eq.s32.totalorder %s26, 1
      %p159 = por %p157, %p158
      %p161 = scmp.ne.s32.totalorder %s144, %s160
      %p162 = scmp.eq.s32.totalorder %s26, 0
      %p163 = por %p161, %p162
      %p164 = scmp.le.s32.totalorder 1, %s20
      %p165 = scmp.lt.s32.totalorder %s20, 3
      %p166 = pnand %p164, %p165
      %p167 = pneg %p166
      // Predicated region
      $region9: #{tpu_custom_call.1} parent=5 // pred_check
        _
      $region10: #{tpu_custom_call.1} parent=5 // pred_check_branch
        %169 = sbr.rel (%p166) target = $region12
      $region11: #{tpu_custom_call.1} parent=5 // pred_region
        %s170 = ssub.s32 %s20, 1
        // Predicated region
        $region13: #{tpu_custom_call.1} parent=11 // pred_check
          %p171 = pneg %p67
        $region14: #{tpu_custom_call.1} parent=11 // pred_check_branch
          %173 = sbr.rel (%p171) target = $region16
        $region15: #{tpu_custom_call.1} parent=11 // pred_region
          %s175 = ssub.s32 8192, 8192
          %176 = vsyncadd [#allocation7], %s175
          %s177 = sshll.u32 [#allocation6], 4
          %s178 = int_to_ptr.vmem [resolvable:$true] %s177
          %183 = dma.hbm_to_vmem [thread:$0]  %s1, 8192, %s178, [#allocation7], 64, 64, 4
        $region16: #{tpu_custom_call.1} parent=11 // pred_fallthru
          _
        // Predicated region
        $region17: #{tpu_custom_call.1} parent=11 // pred_check
          %p184 = pneg %p88
        $region18: #{tpu_custom_call.1} parent=11 // pred_check_branch
          %186 = sbr.rel (%p184) target = $region20
        $region19: #{tpu_custom_call.1} parent=11 // pred_region
          %s188 = ssub.s32 16, 16
          %189 = vsyncadd [#allocation7], %s188
          %s191 = sshll.u32 [#allocation8], 4
          %s192 = int_to_ptr.vmem [resolvable:$true] %s191
          %194 = dma.hbm_to_vmem [thread:$0]  %s2, 16, %s192, [#allocation7]
        $region20: #{tpu_custom_call.1} parent=11 // pred_fallthru
          _
        // Predicated region
        $region21: #{tpu_custom_call.1} parent=11 // pred_check
          %p195 = pneg %p109
        $region22: #{tpu_custom_call.1} parent=11 // pred_check_branch
          %197 = sbr.rel (%p195) target = $region24
        $region23: #{tpu_custom_call.1} parent=11 // pred_region
          %s199 = ssub.s32 16, 16
          %200 = vsyncadd [#allocation10], %s199
          %s202 = sshll.u32 [#allocation9], 4
          %s203 = int_to_ptr.vmem [resolvable:$true] %s202
          %205 = dma.hbm_to_vmem [thread:$0]  %s3, 16, %s203, [#allocation10]
        $region24: #{tpu_custom_call.1} parent=11 // pred_fallthru
          _
        // Predicated region
        $region25: #{tpu_custom_call.1} parent=11 // pred_check
          %p206 = pneg %p130
        $region26: #{tpu_custom_call.1} parent=11 // pred_check_branch
          %208 = sbr.rel (%p206) target = $region28
        $region27: #{tpu_custom_call.1} parent=11 // pred_region
          _
        $region28: #{tpu_custom_call.1} parent=11 // pred_fallthru
          _
      $region12: #{tpu_custom_call.1} parent=5 // pred_fallthru
        _
      %p209 = scmp.lt.s32.totalorder %s20, 2
      // Predicated region
      $region29: #{tpu_custom_call.1} parent=5 // pred_check
        %p210 = pneg %p209
      $region30: #{tpu_custom_call.1} parent=5 // pred_check_branch
        %212 = sbr.rel (%p210) target = $region32
      $region31: #{tpu_custom_call.1} parent=5 // pred_region
        // Predicated region
        $region33: #{tpu_custom_call.1} parent=31 // pred_check
          %p213 = pneg %p40
        $region34: #{tpu_custom_call.1} parent=31 // pred_check_branch
          %215 = sbr.rel (%p213) target = $region36
        $region35: #{tpu_custom_call.1} parent=31 // pred_region
          %s216 = sand.u32 %s30, 1
          %s217 = scalar_lea.sflag [#allocation4], %s216
          %s218 = sand.u32 %s30, 1
          %s219 = smul.addr %s218, 2048
          %s220 = scalar_lea.vmem [#allocation3], %s219
          %s221 = smul.u32 32, %s20
          %s222 = ssub.s32 38, %s221
          %p223 = scmp.lt.s32.totalorder %s222, 32
          %s224 = scalar_select %p223, %s222, 32
          %s225 = smul.u32 128, %s224
          %s226 = smul.u32 %s225, 8
          %s228 = ssub.s32 32768, %s226
          %229 = vsyncadd %s217, %s228
          %p230 = scmp.ne.s32.totalorder 0, %s226
          %s231 = smul.addr %s221, 8
          %s232 = smul.addr %s231, 128
          %s233 = scalar_lea.hbm %s0, %s232
          %s234 = smul.u32 64, %s224
          %s235 = sshll.u32 %s220, 4
          %s236 = int_to_ptr.vmem [resolvable:$true] %s235
          %s237 = sshll.u32 %s234, 4
          %241 = dma.hbm_to_vmem [thread:$0]  (%p230), %s233, %s237, %s236, %s217, 1024, 1024, 64
        $region36: #{tpu_custom_call.1} parent=31 // pred_fallthru
          _
      $region32: #{tpu_custom_call.1} parent=5 // pred_fallthru
        _
      %p242 = scmp.le.s32.totalorder 1, %s20
      %p243 = scmp.lt.s32.totalorder %s20, 3
      %p244 = pnand %p242, %p243
      %p245 = pneg %p244
      // Predicated region
      $region37: #{tpu_custom_call.1} parent=5 // pred_check
        _
      $region38: #{tpu_custom_call.1} parent=5 // pred_check_branch
        %247 = sbr.rel (%p244) target = $region40
      $region39: #{tpu_custom_call.1} parent=5 // pred_region
        %s248 = ssub.s32 %s20, 1
        %s249 = sand.u32 %s33, 1
        %s250 = scalar_lea.sflag [#allocation4], %s249
        %s251 = sand.u32 %s33, 1
        %s252 = smul.addr %s251, 2048
        %s253 = scalar_lea.vmem [#allocation3], %s252
        // Predicated region
        $region41: #{tpu_custom_call.1} parent=39 // pred_check
          %p254 = pneg %p46
        $region42: #{tpu_custom_call.1} parent=39 // pred_check_branch
          %256 = sbr.rel (%p254) target = $region44
        $region43: #{tpu_custom_call.1} parent=39 // pred_region
          %257 = dma.done %s250, 32768
        $region44: #{tpu_custom_call.1} parent=39 // pred_fallthru
          _
        // Predicated region
        $region45: #{tpu_custom_call.1} parent=39 // pred_check
          %p258 = pneg %p67
        $region46: #{tpu_custom_call.1} parent=39 // pred_check_branch
          %260 = sbr.rel (%p258) target = $region48
        $region47: #{tpu_custom_call.1} parent=39 // pred_region
          %261 = dma.done [#allocation7], 8192
        $region48: #{tpu_custom_call.1} parent=39 // pred_fallthru
          _
        // Predicated region
        $region49: #{tpu_custom_call.1} parent=39 // pred_check
          %p262 = pneg %p88
        $region50: #{tpu_custom_call.1} parent=39 // pred_check_branch
          %264 = sbr.rel (%p262) target = $region52
        $region51: #{tpu_custom_call.1} parent=39 // pred_region
          %265 = dma.done [#allocation7], 16
        $region52: #{tpu_custom_call.1} parent=39 // pred_fallthru
          _
        // Predicated region
        $region53: #{tpu_custom_call.1} parent=39 // pred_check
          %p266 = pneg %p109
        $region54: #{tpu_custom_call.1} parent=39 // pred_check_branch
          %268 = sbr.rel (%p266) target = $region56
        $region55: #{tpu_custom_call.1} parent=39 // pred_region
          %269 = dma.done [#allocation10], 16
        $region56: #{tpu_custom_call.1} parent=39 // pred_fallthru
          _
        %s270 = sand.u32 %s33, 1
        %s271 = scalar_lea.sflag [#allocation4], %s270
        %s272 = sand.u32 %s33, 1
        %s273 = smul.addr %s272, 2048
        %s274 = scalar_lea.vmem [#allocation3], %s273
        %p275 = pneg %p46
        %p276 = pneg %p43
        %p277 = pneg %p67
        %p278 = pneg %p64
        %p279 = pneg %p88
        %p280 = pneg %p85
        %p281 = pneg %p109
        %p282 = pneg %p106
        %p283 = pneg %p130
        %p284 = pneg %p127
        %p285 = pneg %p156
        %p286 = pneg %p153
        %s287 = sand.u32 %s143, 1
        %s288 = scalar_lea.sflag [#allocation5], %s287
        %s289 = sand.u32 %s143, 1
        %s290 = smul.addr %s289, 2
        %s291 = scalar_lea.vmem [#allocation11], %s290
        %s292 = smul.u32 32, %s25
        %s293 = ssub.s32 38, %s292
        %p294 = scmp.lt.s32.totalorder %s293, 32
        %s295 = scalar_select %p294, %s293, 32
        %s296 = smul.u32 128, %s295
        %s297 = smul.u32 %s296, 8
        %s298 = smul.u32 2, %s25
        %s299 = ssub.s32 3, %s298
        %p300 = scmp.lt.s32.totalorder %s299, 2
        %s301 = scalar_select %p300, %s299, 2
        %s302 = smul.u32 16, %s301
        %v304 = vld [vmem:[%s253] sm:$0xff]
        %v305 = vld [vmem:[%s253 + $0x8] sm:$0xff]
        %v306 = vld [vmem:[%s253 + $0x10] sm:$0xff]
        %v307 = vld [vmem:[%s253 + $0x18] sm:$0xff]
        %v308 = vld [vmem:[%s253 + $0x20] sm:$0xff]
        %v309 = vld [vmem:[%s253 + $0x28] sm:$0xff]
        %v310 = vld [vmem:[%s253 + $0x30] sm:$0xff]
        %v311 = vld [vmem:[%s253 + $0x38] sm:$0xff]
        %v312 = vld [vmem:[%s253 + $0x40] sm:$0xff]
        %v313 = vld [vmem:[%s253 + $0x48] sm:$0xff]
        %v314 = vld [vmem:[%s253 + $0x50] sm:$0xff]
        %v315 = vld [vmem:[%s253 + $0x58] sm:$0xff]
        %v316 = vld [vmem:[%s253 + $0x60] sm:$0xff]
        %v317 = vld [vmem:[%s253 + $0x68] sm:$0xff]
        %v318 = vld [vmem:[%s253 + $0x70] sm:$0xff]
        %v319 = vld [vmem:[%s253 + $0x78] sm:$0xff]
        %v320 = vld [vmem:[%s253 + $0x80] sm:$0xff]
        %v321 = vld [vmem:[%s253 + $0x88] sm:$0xff]
        %v322 = vld [vmem:[%s253 + $0x90] sm:$0xff]
        %v323 = vld [vmem:[%s253 + $0x98] sm:$0xff]
        %v324 = vld [vmem:[%s253 + $0xa0] sm:$0xff]
        %v325 = vld [vmem:[%s253 + $0xa8] sm:$0xff]
        %v326 = vld [vmem:[%s253 + $0xb0] sm:$0xff]
        %v327 = vld [vmem:[%s253 + $0xb8] sm:$0xff]
        %v328 = vld [vmem:[%s253 + $0xc0] sm:$0xff]
        %v329 = vld [vmem:[%s253 + $0xc8] sm:$0xff]
        %v330 = vld [vmem:[%s253 + $0xd0] sm:$0xff]
        %v331 = vld [vmem:[%s253 + $0xd8] sm:$0xff]
        %v332 = vld [vmem:[%s253 + $0xe0] sm:$0xff]
        %v333 = vld [vmem:[%s253 + $0xe8] sm:$0xff]
        %v334 = vld [vmem:[%s253 + $0xf0] sm:$0xff]
        %v335 = vld [vmem:[%s253 + $0xf8] sm:$0xff]
        %v336 = vld [vmem:[%s253 + $0x100] sm:$0xff]
        %v337 = vld [vmem:[%s253 + $0x108] sm:$0xff]
        %v338 = vld [vmem:[%s253 + $0x110] sm:$0xff]
        %v339 = vld [vmem:[%s253 + $0x118] sm:$0xff]
        %v340 = vld [vmem:[%s253 + $0x120] sm:$0xff]
        %v341 = vld [vmem:[%s253 + $0x128] sm:$0xff]
        %v342 = vld [vmem:[%s253 + $0x130] sm:$0xff]
        %v343 = vld [vmem:[%s253 + $0x138] sm:$0xff]
        %v344 = vld [vmem:[%s253 + $0x140] sm:$0xff]
        %v345 = vld [vmem:[%s253 + $0x148] sm:$0xff]
        %v346 = vld [vmem:[%s253 + $0x150] sm:$0xff]
        %v347 = vld [vmem:[%s253 + $0x158] sm:$0xff]
        %v348 = vld [vmem:[%s253 + $0x160] sm:$0xff]
        %v349 = vld [vmem:[%s253 + $0x168] sm:$0xff]
        %v350 = vld [vmem:[%s253 + $0x170] sm:$0xff]
        %v351 = vld [vmem:[%s253 + $0x178] sm:$0xff]
        %v352 = vld [vmem:[%s253 + $0x180] sm:$0xff]
        %v353 = vld [vmem:[%s253 + $0x188] sm:$0xff]
        %v354 = vld [vmem:[%s253 + $0x190] sm:$0xff]
        %v355 = vld [vmem:[%s253 + $0x198] sm:$0xff]
        %v356 = vld [vmem:[%s253 + $0x1a0] sm:$0xff]
        %v357 = vld [vmem:[%s253 + $0x1a8] sm:$0xff]
        %v358 = vld [vmem:[%s253 + $0x1b0] sm:$0xff]
        %v359 = vld [vmem:[%s253 + $0x1b8] sm:$0xff]
        %v360 = vld [vmem:[%s253 + $0x1c0] sm:$0xff]
        %v361 = vld [vmem:[%s253 + $0x1c8] sm:$0xff]
        %v362 = vld [vmem:[%s253 + $0x1d0] sm:$0xff]
        %v363 = vld [vmem:[%s253 + $0x1d8] sm:$0xff]
        %v364 = vld [vmem:[%s253 + $0x1e0] sm:$0xff]
        %v365 = vld [vmem:[%s253 + $0x1e8] sm:$0xff]
        %v366 = vld [vmem:[%s253 + $0x1f0] sm:$0xff]
        %v367 = vld [vmem:[%s253 + $0x1f8] sm:$0xff]
        %v368 = vld [vmem:[%s253 + $0x200] sm:$0xff]
        %v369 = vld [vmem:[%s253 + $0x208] sm:$0xff]
        %v370 = vld [vmem:[%s253 + $0x210] sm:$0xff]
        %v371 = vld [vmem:[%s253 + $0x218] sm:$0xff]
        %v372 = vld [vmem:[%s253 + $0x220] sm:$0xff]
        %v373 = vld [vmem:[%s253 + $0x228] sm:$0xff]
        %v374 = vld [vmem:[%s253 + $0x230] sm:$0xff]
        %v375 = vld [vmem:[%s253 + $0x238] sm:$0xff]
        %v376 = vld [vmem:[%s253 + $0x240] sm:$0xff]
        %v377 = vld [vmem:[%s253 + $0x248] sm:$0xff]
        %v378 = vld [vmem:[%s253 + $0x250] sm:$0xff]
        %v379 = vld [vmem:[%s253 + $0x258] sm:$0xff]
        %v380 = vld [vmem:[%s253 + $0x260] sm:$0xff]
        %v381 = vld [vmem:[%s253 + $0x268] sm:$0xff]
        %v382 = vld [vmem:[%s253 + $0x270] sm:$0xff]
        %v383 = vld [vmem:[%s253 + $0x278] sm:$0xff]
        %v384 = vld [vmem:[%s253 + $0x280] sm:$0xff]
        %v385 = vld [vmem:[%s253 + $0x288] sm:$0xff]
        %v386 = vld [vmem:[%s253 + $0x290] sm:$0xff]
        %v387 = vld [vmem:[%s253 + $0x298] sm:$0xff]
        %v388 = vld [vmem:[%s253 + $0x2a0] sm:$0xff]
        %v389 = vld [vmem:[%s253 + $0x2a8] sm:$0xff]
        %v390 = vld [vmem:[%s253 + $0x2b0] sm:$0xff]
        %v391 = vld [vmem:[%s253 + $0x2b8] sm:$0xff]
        %v392 = vld [vmem:[%s253 + $0x2c0] sm:$0xff]
        %v393 = vld [vmem:[%s253 + $0x2c8] sm:$0xff]
        %v394 = vld [vmem:[%s253 + $0x2d0] sm:$0xff]
        %v395 = vld [vmem:[%s253 + $0x2d8] sm:$0xff]
        %v396 = vld [vmem:[%s253 + $0x2e0] sm:$0xff]
        %v397 = vld [vmem:[%s253 + $0x2e8] sm:$0xff]
        %v398 = vld [vmem:[%s253 + $0x2f0] sm:$0xff]
        %v399 = vld [vmem:[%s253 + $0x2f8] sm:$0xff]
        %v400 = vld [vmem:[%s253 + $0x300] sm:$0xff]
        %v401 = vld [vmem:[%s253 + $0x308] sm:$0xff]
        %v402 = vld [vmem:[%s253 + $0x310] sm:$0xff]
        %v403 = vld [vmem:[%s253 + $0x318] sm:$0xff]
        %v404 = vld [vmem:[%s253 + $0x320] sm:$0xff]
        %v405 = vld [vmem:[%s253 + $0x328] sm:$0xff]
        %v406 = vld [vmem:[%s253 + $0x330] sm:$0xff]
        %v407 = vld [vmem:[%s253 + $0x338] sm:$0xff]
        %v408 = vld [vmem:[%s253 + $0x340] sm:$0xff]
        %v409 = vld [vmem:[%s253 + $0x348] sm:$0xff]
        %v410 = vld [vmem:[%s253 + $0x350] sm:$0xff]
        %v411 = vld [vmem:[%s253 + $0x358] sm:$0xff]
        %v412 = vld [vmem:[%s253 + $0x360] sm:$0xff]
        %v413 = vld [vmem:[%s253 + $0x368] sm:$0xff]
        %v414 = vld [vmem:[%s253 + $0x370] sm:$0xff]
        %v415 = vld [vmem:[%s253 + $0x378] sm:$0xff]
        %v416 = vld [vmem:[%s253 + $0x380] sm:$0xff]
        %v417 = vld [vmem:[%s253 + $0x388] sm:$0xff]
        %v418 = vld [vmem:[%s253 + $0x390] sm:$0xff]
        %v419 = vld [vmem:[%s253 + $0x398] sm:$0xff]
        %v420 = vld [vmem:[%s253 + $0x3a0] sm:$0xff]
        %v421 = vld [vmem:[%s253 + $0x3a8] sm:$0xff]
        %v422 = vld [vmem:[%s253 + $0x3b0] sm:$0xff]
        %v423 = vld [vmem:[%s253 + $0x3b8] sm:$0xff]
        %v424 = vld [vmem:[%s253 + $0x3c0] sm:$0xff]
        %v425 = vld [vmem:[%s253 + $0x3c8] sm:$0xff]
        %v426 = vld [vmem:[%s253 + $0x3d0] sm:$0xff]
        %v427 = vld [vmem:[%s253 + $0x3d8] sm:$0xff]
        %v428 = vld [vmem:[%s253 + $0x3e0] sm:$0xff]
        %v429 = vld [vmem:[%s253 + $0x3e8] sm:$0xff]
        %v430 = vld [vmem:[%s253 + $0x3f0] sm:$0xff]
        %v431 = vld [vmem:[%s253 + $0x3f8] sm:$0xff]
        %v432 = vld [vmem:[%s253 + $0x400] sm:$0xff]
        %v433 = vld [vmem:[%s253 + $0x408] sm:$0xff]
        %v434 = vld [vmem:[%s253 + $0x410] sm:$0xff]
        %v435 = vld [vmem:[%s253 + $0x418] sm:$0xff]
        %v436 = vld [vmem:[%s253 + $0x420] sm:$0xff]
        %v437 = vld [vmem:[%s253 + $0x428] sm:$0xff]
        %v438 = vld [vmem:[%s253 + $0x430] sm:$0xff]
        %v439 = vld [vmem:[%s253 + $0x438] sm:$0xff]
        %v440 = vld [vmem:[%s253 + $0x440] sm:$0xff]
        %v441 = vld [vmem:[%s253 + $0x448] sm:$0xff]
        %v442 = vld [vmem:[%s253 + $0x450] sm:$0xff]
        %v443 = vld [vmem:[%s253 + $0x458] sm:$0xff]
        %v444 = vld [vmem:[%s253 + $0x460] sm:$0xff]
        %v445 = vld [vmem:[%s253 + $0x468] sm:$0xff]
        %v446 = vld [vmem:[%s253 + $0x470] sm:$0xff]
        %v447 = vld [vmem:[%s253 + $0x478] sm:$0xff]
        %v448 = vld [vmem:[%s253 + $0x480] sm:$0xff]
        %v449 = vld [vmem:[%s253 + $0x488] sm:$0xff]
        %v450 = vld [vmem:[%s253 + $0x490] sm:$0xff]
        %v451 = vld [vmem:[%s253 + $0x498] sm:$0xff]
        %v452 = vld [vmem:[%s253 + $0x4a0] sm:$0xff]
        %v453 = vld [vmem:[%s253 + $0x4a8] sm:$0xff]
        %v454 = vld [vmem:[%s253 + $0x4b0] sm:$0xff]
        %v455 = vld [vmem:[%s253 + $0x4b8] sm:$0xff]
        %v456 = vld [vmem:[%s253 + $0x4c0] sm:$0xff]
        %v457 = vld [vmem:[%s253 + $0x4c8] sm:$0xff]
        %v458 = vld [vmem:[%s253 + $0x4d0] sm:$0xff]
        %v459 = vld [vmem:[%s253 + $0x4d8] sm:$0xff]
        %v460 = vld [vmem:[%s253 + $0x4e0] sm:$0xff]
        %v461 = vld [vmem:[%s253 + $0x4e8] sm:$0xff]
        %v462 = vld [vmem:[%s253 + $0x4f0] sm:$0xff]
        %v463 = vld [vmem:[%s253 + $0x4f8] sm:$0xff]
        %v464 = vld [vmem:[%s253 + $0x500] sm:$0xff]
        %v465 = vld [vmem:[%s253 + $0x508] sm:$0xff]
        %v466 = vld [vmem:[%s253 + $0x510] sm:$0xff]
        %v467 = vld [vmem:[%s253 + $0x518] sm:$0xff]
        %v468 = vld [vmem:[%s253 + $0x520] sm:$0xff]
        %v469 = vld [vmem:[%s253 + $0x528] sm:$0xff]
        %v470 = vld [vmem:[%s253 + $0x530] sm:$0xff]
        %v471 = vld [vmem:[%s253 + $0x538] sm:$0xff]
        %v472 = vld [vmem:[%s253 + $0x540] sm:$0xff]
        %v473 = vld [vmem:[%s253 + $0x548] sm:$0xff]
        %v474 = vld [vmem:[%s253 + $0x550] sm:$0xff]
        %v475 = vld [vmem:[%s253 + $0x558] sm:$0xff]
        %v476 = vld [vmem:[%s253 + $0x560] sm:$0xff]
        %v477 = vld [vmem:[%s253 + $0x568] sm:$0xff]
        %v478 = vld [vmem:[%s253 + $0x570] sm:$0xff]
        %v479 = vld [vmem:[%s253 + $0x578] sm:$0xff]
        %v480 = vld [vmem:[%s253 + $0x580] sm:$0xff]
        %v481 = vld [vmem:[%s253 + $0x588] sm:$0xff]
        %v482 = vld [vmem:[%s253 + $0x590] sm:$0xff]
        %v483 = vld [vmem:[%s253 + $0x598] sm:$0xff]
        %v484 = vld [vmem:[%s253 + $0x5a0] sm:$0xff]
        %v485 = vld [vmem:[%s253 + $0x5a8] sm:$0xff]
        %v486 = vld [vmem:[%s253 + $0x5b0] sm:$0xff]
        %v487 = vld [vmem:[%s253 + $0x5b8] sm:$0xff]
        %v488 = vld [vmem:[%s253 + $0x5c0] sm:$0xff]
        %v489 = vld [vmem:[%s253 + $0x5c8] sm:$0xff]
        %v490 = vld [vmem:[%s253 + $0x5d0] sm:$0xff]
        %v491 = vld [vmem:[%s253 + $0x5d8] sm:$0xff]
        %v492 = vld [vmem:[%s253 + $0x5e0] sm:$0xff]
        %v493 = vld [vmem:[%s253 + $0x5e8] sm:$0xff]
        %v494 = vld [vmem:[%s253 + $0x5f0] sm:$0xff]
        %v495 = vld [vmem:[%s253 + $0x5f8] sm:$0xff]
        %v496 = vld [vmem:[%s253 + $0x600] sm:$0xff]
        %v497 = vld [vmem:[%s253 + $0x608] sm:$0xff]
        %v498 = vld [vmem:[%s253 + $0x610] sm:$0xff]
        %v499 = vld [vmem:[%s253 + $0x618] sm:$0xff]
        %v500 = vld [vmem:[%s253 + $0x620] sm:$0xff]
        %v501 = vld [vmem:[%s253 + $0x628] sm:$0xff]
        %v502 = vld [vmem:[%s253 + $0x630] sm:$0xff]
        %v503 = vld [vmem:[%s253 + $0x638] sm:$0xff]
        %v504 = vld [vmem:[%s253 + $0x640] sm:$0xff]
        %v505 = vld [vmem:[%s253 + $0x648] sm:$0xff]
        %v506 = vld [vmem:[%s253 + $0x650] sm:$0xff]
        %v507 = vld [vmem:[%s253 + $0x658] sm:$0xff]
        %v508 = vld [vmem:[%s253 + $0x660] sm:$0xff]
        %v509 = vld [vmem:[%s253 + $0x668] sm:$0xff]
        %v510 = vld [vmem:[%s253 + $0x670] sm:$0xff]
        %v511 = vld [vmem:[%s253 + $0x678] sm:$0xff]
        %v512 = vld [vmem:[%s253 + $0x680] sm:$0xff]
        %v513 = vld [vmem:[%s253 + $0x688] sm:$0xff]
        %v514 = vld [vmem:[%s253 + $0x690] sm:$0xff]
        %v515 = vld [vmem:[%s253 + $0x698] sm:$0xff]
        %v516 = vld [vmem:[%s253 + $0x6a0] sm:$0xff]
        %v517 = vld [vmem:[%s253 + $0x6a8] sm:$0xff]
        %v518 = vld [vmem:[%s253 + $0x6b0] sm:$0xff]
        %v519 = vld [vmem:[%s253 + $0x6b8] sm:$0xff]
        %v520 = vld [vmem:[%s253 + $0x6c0] sm:$0xff]
        %v521 = vld [vmem:[%s253 + $0x6c8] sm:$0xff]
        %v522 = vld [vmem:[%s253 + $0x6d0] sm:$0xff]
        %v523 = vld [vmem:[%s253 + $0x6d8] sm:$0xff]
        %v524 = vld [vmem:[%s253 + $0x6e0] sm:$0xff]
        %v525 = vld [vmem:[%s253 + $0x6e8] sm:$0xff]
        %v526 = vld [vmem:[%s253 + $0x6f0] sm:$0xff]
        %v527 = vld [vmem:[%s253 + $0x6f8] sm:$0xff]
        %v528 = vld [vmem:[%s253 + $0x700] sm:$0xff]
        %v529 = vld [vmem:[%s253 + $0x708] sm:$0xff]
        %v530 = vld [vmem:[%s253 + $0x710] sm:$0xff]
        %v531 = vld [vmem:[%s253 + $0x718] sm:$0xff]
        %v532 = vld [vmem:[%s253 + $0x720] sm:$0xff]
        %v533 = vld [vmem:[%s253 + $0x728] sm:$0xff]
        %v534 = vld [vmem:[%s253 + $0x730] sm:$0xff]
        %v535 = vld [vmem:[%s253 + $0x738] sm:$0xff]
        %v536 = vld [vmem:[%s253 + $0x740] sm:$0xff]
        %v537 = vld [vmem:[%s253 + $0x748] sm:$0xff]
        %v538 = vld [vmem:[%s253 + $0x750] sm:$0xff]
        %v539 = vld [vmem:[%s253 + $0x758] sm:$0xff]
        %v540 = vld [vmem:[%s253 + $0x760] sm:$0xff]
        %v541 = vld [vmem:[%s253 + $0x768] sm:$0xff]
        %v542 = vld [vmem:[%s253 + $0x770] sm:$0xff]
        %v543 = vld [vmem:[%s253 + $0x778] sm:$0xff]
        %v544 = vld [vmem:[%s253 + $0x780] sm:$0xff]
        %v545 = vld [vmem:[%s253 + $0x788] sm:$0xff]
        %v546 = vld [vmem:[%s253 + $0x790] sm:$0xff]
        %v547 = vld [vmem:[%s253 + $0x798] sm:$0xff]
        %v548 = vld [vmem:[%s253 + $0x7a0] sm:$0xff]
        %v549 = vld [vmem:[%s253 + $0x7a8] sm:$0xff]
        %v550 = vld [vmem:[%s253 + $0x7b0] sm:$0xff]
        %v551 = vld [vmem:[%s253 + $0x7b8] sm:$0xff]
        %v552 = vld [vmem:[%s253 + $0x7c0] sm:$0xff]
        %v553 = vld [vmem:[%s253 + $0x7c8] sm:$0xff]
        %v554 = vld [vmem:[%s253 + $0x7d0] sm:$0xff]
        %v555 = vld [vmem:[%s253 + $0x7d8] sm:$0xff]
        %v556 = vld [vmem:[%s253 + $0x7e0] sm:$0xff]
        %v557 = vld [vmem:[%s253 + $0x7e8] sm:$0xff]
        %v558 = vld [vmem:[%s253 + $0x7f0] sm:$0xff]
        %v559 = vld [vmem:[%s253 + $0x7f8] sm:$0xff]
        %v560 = vpack.c.bf16 %v312, %v304
        %v561 = vpack.c.bf16 %v313, %v305
        %v562 = vpack.c.bf16 %v314, %v306
        %v563 = vpack.c.bf16 %v315, %v307
        %v564 = vpack.c.bf16 %v316, %v308
        %v565 = vpack.c.bf16 %v317, %v309
        %v566 = vpack.c.bf16 %v318, %v310
        %v567 = vpack.c.bf16 %v319, %v311
        %v568 = vpack.c.bf16 %v328, %v320
        %v569 = vpack.c.bf16 %v329, %v321
        %v570 = vpack.c.bf16 %v330, %v322
        %v571 = vpack.c.bf16 %v331, %v323
        %v572 = vpack.c.bf16 %v332, %v324
        %v573 = vpack.c.bf16 %v333, %v325
        %v574 = vpack.c.bf16 %v334, %v326
        %v575 = vpack.c.bf16 %v335, %v327
        %v576 = vpack.c.bf16 %v344, %v336
        %v577 = vpack.c.bf16 %v345, %v337
        %v578 = vpack.c.bf16 %v346, %v338
        %v579 = vpack.c.bf16 %v347, %v339
        %v580 = vpack.c.bf16 %v348, %v340
        %v581 = vpack.c.bf16 %v349, %v341
        %v582 = vpack.c.bf16 %v350, %v342
        %v583 = vpack.c.bf16 %v351, %v343
        %v584 = vpack.c.bf16 %v360, %v352
        %v585 = vpack.c.bf16 %v361, %v353
        %v586 = vpack.c.bf16 %v362, %v354
        %v587 = vpack.c.bf16 %v363, %v355
        %v588 = vpack.c.bf16 %v364, %v356
        %v589 = vpack.c.bf16 %v365, %v357
        %v590 = vpack.c.bf16 %v366, %v358
        %v591 = vpack.c.bf16 %v367, %v359
        %v592 = vpack.c.bf16 %v376, %v368
        %v593 = vpack.c.bf16 %v377, %v369
        %v594 = vpack.c.bf16 %v378, %v370
        %v595 = vpack.c.bf16 %v379, %v371
        %v596 = vpack.c.bf16 %v380, %v372
        %v597 = vpack.c.bf16 %v381, %v373
        %v598 = vpack.c.bf16 %v382, %v374
        %v599 = vpack.c.bf16 %v383, %v375
        %v600 = vpack.c.bf16 %v392, %v384
        %v601 = vpack.c.bf16 %v393, %v385
        %v602 = vpack.c.bf16 %v394, %v386
        %v603 = vpack.c.bf16 %v395, %v387
        %v604 = vpack.c.bf16 %v396, %v388
        %v605 = vpack.c.bf16 %v397, %v389
        %v606 = vpack.c.bf16 %v398, %v390
        %v607 = vpack.c.bf16 %v399, %v391
        %v608 = vpack.c.bf16 %v408, %v400
        %v609 = vpack.c.bf16 %v409, %v401
        %v610 = vpack.c.bf16 %v410, %v402
        %v611 = vpack.c.bf16 %v411, %v403
        %v612 = vpack.c.bf16 %v412, %v404
        %v613 = vpack.c.bf16 %v413, %v405
        %v614 = vpack.c.bf16 %v414, %v406
        %v615 = vpack.c.bf16 %v415, %v407
        %v616 = vpack.c.bf16 %v424, %v416
        %v617 = vpack.c.bf16 %v425, %v417
        %v618 = vpack.c.bf16 %v426, %v418
        %v619 = vpack.c.bf16 %v427, %v419
        %v620 = vpack.c.bf16 %v428, %v420
        %v621 = vpack.c.bf16 %v429, %v421
        %v622 = vpack.c.bf16 %v430, %v422
        %v623 = vpack.c.bf16 %v431, %v423
        %v624 = vpack.c.bf16 %v440, %v432
        %v625 = vpack.c.bf16 %v441, %v433
        %v626 = vpack.c.bf16 %v442, %v434
        %v627 = vpack.c.bf16 %v443, %v435
        %v628 = vpack.c.bf16 %v444, %v436
        %v629 = vpack.c.bf16 %v445, %v437
        %v630 = vpack.c.bf16 %v446, %v438
        %v631 = vpack.c.bf16 %v447, %v439
        %v632 = vpack.c.bf16 %v456, %v448
        %v633 = vpack.c.bf16 %v457, %v449
        %v634 = vpack.c.bf16 %v458, %v450
        %v635 = vpack.c.bf16 %v459, %v451
        %v636 = vpack.c.bf16 %v460, %v452
        %v637 = vpack.c.bf16 %v461, %v453
        %v638 = vpack.c.bf16 %v462, %v454
        %v639 = vpack.c.bf16 %v463, %v455
        %v640 = vpack.c.bf16 %v472, %v464
        %v641 = vpack.c.bf16 %v473, %v465
        %v642 = vpack.c.bf16 %v474, %v466
        %v643 = vpack.c.bf16 %v475, %v467
        %v644 = vpack.c.bf16 %v476, %v468
        %v645 = vpack.c.bf16 %v477, %v469
        %v646 = vpack.c.bf16 %v478, %v470
        %v647 = vpack.c.bf16 %v479, %v471
        %v648 = vpack.c.bf16 %v488, %v480
        %v649 = vpack.c.bf16 %v489, %v481
        %v650 = vpack.c.bf16 %v490, %v482
        %v651 = vpack.c.bf16 %v491, %v483
        %v652 = vpack.c.bf16 %v492, %v484
        %v653 = vpack.c.bf16 %v493, %v485
        %v654 = vpack.c.bf16 %v494, %v486
        %v655 = vpack.c.bf16 %v495, %v487
        %v656 = vpack.c.bf16 %v504, %v496
        %v657 = vpack.c.bf16 %v505, %v497
        %v658 = vpack.c.bf16 %v506, %v498
        %v659 = vpack.c.bf16 %v507, %v499
        %v660 = vpack.c.bf16 %v508, %v500
        %v661 = vpack.c.bf16 %v509, %v501
        %v662 = vpack.c.bf16 %v510, %v502
        %v663 = vpack.c.bf16 %v511, %v503
        %v664 = vpack.c.bf16 %v520, %v512
        %v665 = vpack.c.bf16 %v521, %v513
        %v666 = vpack.c.bf16 %v522, %v514
        %v667 = vpack.c.bf16 %v523, %v515
        %v668 = vpack.c.bf16 %v524, %v516
        %v669 = vpack.c.bf16 %v525, %v517
        %v670 = vpack.c.bf16 %v526, %v518
        %v671 = vpack.c.bf16 %v527, %v519
        %v672 = vpack.c.bf16 %v536, %v528
        %v673 = vpack.c.bf16 %v537, %v529
        %v674 = vpack.c.bf16 %v538, %v530
        %v675 = vpack.c.bf16 %v539, %v531
        %v676 = vpack.c.bf16 %v540, %v532
        %v677 = vpack.c.bf16 %v541, %v533
        %v678 = vpack.c.bf16 %v542, %v534
        %v679 = vpack.c.bf16 %v543, %v535
        %v680 = vpack.c.bf16 %v552, %v544
        %v681 = vpack.c.bf16 %v553, %v545
        %v682 = vpack.c.bf16 %v554, %v546
        %v683 = vpack.c.bf16 %v555, %v547
        %v684 = vpack.c.bf16 %v556, %v548
        %v685 = vpack.c.bf16 %v557, %v549
        %v686 = vpack.c.bf16 %v558, %v550
        %v687 = vpack.c.bf16 %v559, %v551
        %v688 = vld [vmem:[#allocation6] sm:$0xf]
        %v689 = vld [vmem:[#allocation6 + $0x4] sm:$0xf]
        %v690 = vld [vmem:[#allocation6 + $0x8] sm:$0xf]
        %v691 = vld [vmem:[#allocation6 + $0xc] sm:$0xf]
        %v692 = vld [vmem:[#allocation6 + $0x10] sm:$0xf]
        %v693 = vld [vmem:[#allocation6 + $0x14] sm:$0xf]
        %v694 = vld [vmem:[#allocation6 + $0x18] sm:$0xf]
        %v695 = vld [vmem:[#allocation6 + $0x1c] sm:$0xf]
        %v696 = vld [vmem:[#allocation6 + $0x20] sm:$0xf]
        %v697 = vld [vmem:[#allocation6 + $0x24] sm:$0xf]
        %v698 = vld [vmem:[#allocation6 + $0x28] sm:$0xf]
        %v699 = vld [vmem:[#allocation6 + $0x2c] sm:$0xf]
        %v700 = vld [vmem:[#allocation6 + $0x30] sm:$0xf]
        %v701 = vld [vmem:[#allocation6 + $0x34] sm:$0xf]
        %v702 = vld [vmem:[#allocation6 + $0x38] sm:$0xf]
        %v703 = vld [vmem:[#allocation6 + $0x3c] sm:$0xf]
        %v704 = vld [vmem:[#allocation6 + $0x40] sm:$0xf]
        %v705 = vld [vmem:[#allocation6 + $0x44] sm:$0xf]
        %v706 = vld [vmem:[#allocation6 + $0x48] sm:$0xf]
        %v707 = vld [vmem:[#allocation6 + $0x4c] sm:$0xf]
        %v708 = vld [vmem:[#allocation6 + $0x50] sm:$0xf]
        %v709 = vld [vmem:[#allocation6 + $0x54] sm:$0xf]
        %v710 = vld [vmem:[#allocation6 + $0x58] sm:$0xf]
        %v711 = vld [vmem:[#allocation6 + $0x5c] sm:$0xf]
        %v712 = vld [vmem:[#allocation6 + $0x60] sm:$0xf]
        %v713 = vld [vmem:[#allocation6 + $0x64] sm:$0xf]
        %v714 = vld [vmem:[#allocation6 + $0x68] sm:$0xf]
        %v715 = vld [vmem:[#allocation6 + $0x6c] sm:$0xf]
        %v716 = vld [vmem:[#allocation6 + $0x70] sm:$0xf]
        %v717 = vld [vmem:[#allocation6 + $0x74] sm:$0xf]
        %v718 = vld [vmem:[#allocation6 + $0x78] sm:$0xf]
        %v719 = vld [vmem:[#allocation6 + $0x7c] sm:$0xf]
        %v720 = vld [vmem:[#allocation6 + $0x80] sm:$0xf]
        %v721 = vld [vmem:[#allocation6 + $0x84] sm:$0xf]
        %v722 = vld [vmem:[#allocation6 + $0x88] sm:$0xf]
        %v723 = vld [vmem:[#allocation6 + $0x8c] sm:$0xf]
        %v724 = vld [vmem:[#allocation6 + $0x90] sm:$0xf]
        %v725 = vld [vmem:[#allocation6 + $0x94] sm:$0xf]
        %v726 = vld [vmem:[#allocation6 + $0x98] sm:$0xf]
        %v727 = vld [vmem:[#allocation6 + $0x9c] sm:$0xf]
        %v728 = vld [vmem:[#allocation6 + $0xa0] sm:$0xf]
        %v729 = vld [vmem:[#allocation6 + $0xa4] sm:$0xf]
        %v730 = vld [vmem:[#allocation6 + $0xa8] sm:$0xf]
        %v731 = vld [vmem:[#allocation6 + $0xac] sm:$0xf]
        %v732 = vld [vmem:[#allocation6 + $0xb0] sm:$0xf]
        %v733 = vld [vmem:[#allocation6 + $0xb4] sm:$0xf]
        %v734 = vld [vmem:[#allocation6 + $0xb8] sm:$0xf]
        %v735 = vld [vmem:[#allocation6 + $0xbc] sm:$0xf]
        %v736 = vld [vmem:[#allocation6 + $0xc0] sm:$0xf]
        %v737 = vld [vmem:[#allocation6 + $0xc4] sm:$0xf]
        %v738 = vld [vmem:[#allocation6 + $0xc8] sm:$0xf]
        %v739 = vld [vmem:[#allocation6 + $0xcc] sm:$0xf]
        %v740 = vld [vmem:[#allocation6 + $0xd0] sm:$0xf]
        %v741 = vld [vmem:[#allocation6 + $0xd4] sm:$0xf]
        %v742 = vld [vmem:[#allocation6 + $0xd8] sm:$0xf]
        %v743 = vld [vmem:[#allocation6 + $0xdc] sm:$0xf]
        %v744 = vld [vmem:[#allocation6 + $0xe0] sm:$0xf]
        %v745 = vld [vmem:[#allocation6 + $0xe4] sm:$0xf]
        %v746 = vld [vmem:[#allocation6 + $0xe8] sm:$0xf]
        %v747 = vld [vmem:[#allocation6 + $0xec] sm:$0xf]
        %v748 = vld [vmem:[#allocation6 + $0xf0] sm:$0xf]
        %v749 = vld [vmem:[#allocation6 + $0xf4] sm:$0xf]
        %v750 = vld [vmem:[#allocation6 + $0xf8] sm:$0xf]
        %v751 = vld [vmem:[#allocation6 + $0xfc] sm:$0xf]
        %v752 = vld [vmem:[#allocation6 + $0x100] sm:$0xf]
        %v753 = vld [vmem:[#allocation6 + $0x104] sm:$0xf]
        %v754 = vld [vmem:[#allocation6 + $0x108] sm:$0xf]
        %v755 = vld [vmem:[#allocation6 + $0x10c] sm:$0xf]
        %v756 = vld [vmem:[#allocation6 + $0x110] sm:$0xf]
        %v757 = vld [vmem:[#allocation6 + $0x114] sm:$0xf]
        %v758 = vld [vmem:[#allocation6 + $0x118] sm:$0xf]
        %v759 = vld [vmem:[#allocation6 + $0x11c] sm:$0xf]
        %v760 = vld [vmem:[#allocation6 + $0x120] sm:$0xf]
        %v761 = vld [vmem:[#allocation6 + $0x124] sm:$0xf]
        %v762 = vld [vmem:[#allocation6 + $0x128] sm:$0xf]
        %v763 = vld [vmem:[#allocation6 + $0x12c] sm:$0xf]
        %v764 = vld [vmem:[#allocation6 + $0x130] sm:$0xf]
        %v765 = vld [vmem:[#allocation6 + $0x134] sm:$0xf]
        %v766 = vld [vmem:[#allocation6 + $0x138] sm:$0xf]
        %v767 = vld [vmem:[#allocation6 + $0x13c] sm:$0xf]
        %v768 = vld [vmem:[#allocation6 + $0x140] sm:$0xf]
        %v769 = vld [vmem:[#allocation6 + $0x144] sm:$0xf]
        %v770 = vld [vmem:[#allocation6 + $0x148] sm:$0xf]
        %v771 = vld [vmem:[#allocation6 + $0x14c] sm:$0xf]
        %v772 = vld [vmem:[#allocation6 + $0x150] sm:$0xf]
        %v773 = vld [vmem:[#allocation6 + $0x154] sm:$0xf]
        %v774 = vld [vmem:[#allocation6 + $0x158] sm:$0xf]
        %v775 = vld [vmem:[#allocation6 + $0x15c] sm:$0xf]
        %v776 = vld [vmem:[#allocation6 + $0x160] sm:$0xf]
        %v777 = vld [vmem:[#allocation6 + $0x164] sm:$0xf]
        %v778 = vld [vmem:[#allocation6 + $0x168] sm:$0xf]
        %v779 = vld [vmem:[#allocation6 + $0x16c] sm:$0xf]
        %v780 = vld [vmem:[#allocation6 + $0x170] sm:$0xf]
        %v781 = vld [vmem:[#allocation6 + $0x174] sm:$0xf]
        %v782 = vld [vmem:[#allocation6 + $0x178] sm:$0xf]
        %v783 = vld [vmem:[#allocation6 + $0x17c] sm:$0xf]
        %v784 = vld [vmem:[#allocation6 + $0x180] sm:$0xf]
        %v785 = vld [vmem:[#allocation6 + $0x184] sm:$0xf]
        %v786 = vld [vmem:[#allocation6 + $0x188] sm:$0xf]
        %v787 = vld [vmem:[#allocation6 + $0x18c] sm:$0xf]
        %v788 = vld [vmem:[#allocation6 + $0x190] sm:$0xf]
        %v789 = vld [vmem:[#allocation6 + $0x194] sm:$0xf]
        %v790 = vld [vmem:[#allocation6 + $0x198] sm:$0xf]
        %v791 = vld [vmem:[#allocation6 + $0x19c] sm:$0xf]
        %v792 = vld [vmem:[#allocation6 + $0x1a0] sm:$0xf]
        %v793 = vld [vmem:[#allocation6 + $0x1a4] sm:$0xf]
        %v794 = vld [vmem:[#allocation6 + $0x1a8] sm:$0xf]
        %v795 = vld [vmem:[#allocation6 + $0x1ac] sm:$0xf]
        %v796 = vld [vmem:[#allocation6 + $0x1b0] sm:$0xf]
        %v797 = vld [vmem:[#allocation6 + $0x1b4] sm:$0xf]
        %v798 = vld [vmem:[#allocation6 + $0x1b8] sm:$0xf]
        %v799 = vld [vmem:[#allocation6 + $0x1bc] sm:$0xf]
        %v800 = vld [vmem:[#allocation6 + $0x1c0] sm:$0xf]
        %v801 = vld [vmem:[#allocation6 + $0x1c4] sm:$0xf]
        %v802 = vld [vmem:[#allocation6 + $0x1c8] sm:$0xf]
        %v803 = vld [vmem:[#allocation6 + $0x1cc] sm:$0xf]
        %v804 = vld [vmem:[#allocation6 + $0x1d0] sm:$0xf]
        %v805 = vld [vmem:[#allocation6 + $0x1d4] sm:$0xf]
        %v806 = vld [vmem:[#allocation6 + $0x1d8] sm:$0xf]
        %v807 = vld [vmem:[#allocation6 + $0x1dc] sm:$0xf]
        %v808 = vld [vmem:[#allocation6 + $0x1e0] sm:$0xf]
        %v809 = vld [vmem:[#allocation6 + $0x1e4] sm:$0xf]
        %v810 = vld [vmem:[#allocation6 + $0x1e8] sm:$0xf]
        %v811 = vld [vmem:[#allocation6 + $0x1ec] sm:$0xf]
        %v812 = vld [vmem:[#allocation6 + $0x1f0] sm:$0xf]
        %v813 = vld [vmem:[#allocation6 + $0x1f4] sm:$0xf]
        %v814 = vld [vmem:[#allocation6 + $0x1f8] sm:$0xf]
        %v815 = vld [vmem:[#allocation6 + $0x1fc] sm:$0xf]
        %v816 = vld [vmem:[#allocation8] sm:$0x1]
        %v818 = vlaneseq
        %v819 = vshrl.u32 %v818, 7
        %v820 = vsub.s32 0, %v819
        %v821 = vrot.slane %v816, %v820
        %v951 = vunpack.c.l.b16 %v688
        %v952 = vunpack.c.l.b16 %v689
        %v953 = vunpack.c.l.b16 %v690
        %v954 = vunpack.c.l.b16 %v691
        %v955 = vunpack.c.l.b16 %v692
        %v956 = vunpack.c.l.b16 %v693
        %v957 = vunpack.c.l.b16 %v694
        %v958 = vunpack.c.l.b16 %v695
        %v959 = vunpack.c.l.b16 %v696
        %v960 = vunpack.c.l.b16 %v697
        %v961 = vunpack.c.l.b16 %v698
        %v962 = vunpack.c.l.b16 %v699
        %v963 = vunpack.c.l.b16 %v700
        %v964 = vunpack.c.l.b16 %v701
        %v965 = vunpack.c.l.b16 %v702
        %v966 = vunpack.c.l.b16 %v703
        %v967 = vunpack.c.l.b16 %v704
        %v968 = vunpack.c.l.b16 %v705
        %v969 = vunpack.c.l.b16 %v706
        %v970 = vunpack.c.l.b16 %v707
        %v971 = vunpack.c.l.b16 %v708
        %v972 = vunpack.c.l.b16 %v709
        %v973 = vunpack.c.l.b16 %v710
        %v974 = vunpack.c.l.b16 %v711
        %v975 = vunpack.c.l.b16 %v712
        %v976 = vunpack.c.l.b16 %v713
        %v977 = vunpack.c.l.b16 %v714
        %v978 = vunpack.c.l.b16 %v715
        %v979 = vunpack.c.l.b16 %v716
        %v980 = vunpack.c.l.b16 %v717
        %v981 = vunpack.c.l.b16 %v718
        %v982 = vunpack.c.l.b16 %v719
        %v983 = vunpack.c.l.b16 %v720
        %v984 = vunpack.c.l.b16 %v721
        %v985 = vunpack.c.l.b16 %v722
        %v986 = vunpack.c.l.b16 %v723
        %v987 = vunpack.c.l.b16 %v724
        %v988 = vunpack.c.l.b16 %v725
        %v989 = vunpack.c.l.b16 %v726
        %v990 = vunpack.c.l.b16 %v727
        %v991 = vunpack.c.l.b16 %v728
        %v992 = vunpack.c.l.b16 %v729
        %v993 = vunpack.c.l.b16 %v730
        %v994 = vunpack.c.l.b16 %v731
        %v995 = vunpack.c.l.b16 %v732
        %v996 = vunpack.c.l.b16 %v733
        %v997 = vunpack.c.l.b16 %v734
        %v998 = vunpack.c.l.b16 %v735
        %v999 = vunpack.c.l.b16 %v736
        %v1000 = vunpack.c.l.b16 %v737
        %v1001 = vunpack.c.l.b16 %v738
        %v1002 = vunpack.c.l.b16 %v739
        %v1003 = vunpack.c.l.b16 %v740
        %v1004 = vunpack.c.l.b16 %v741
        %v1005 = vunpack.c.l.b16 %v742
        %v1006 = vunpack.c.l.b16 %v743
        %v1007 = vunpack.c.l.b16 %v744
        %v1008 = vunpack.c.l.b16 %v745
        %v1009 = vunpack.c.l.b16 %v746
        %v1010 = vunpack.c.l.b16 %v747
        %v1011 = vunpack.c.l.b16 %v748
        %v1012 = vunpack.c.l.b16 %v749
        %v1013 = vunpack.c.l.b16 %v750
        %v1014 = vunpack.c.l.b16 %v751
        %v1015 = vunpack.c.l.b16 %v752
        %v1016 = vunpack.c.l.b16 %v753
        %v1017 = vunpack.c.l.b16 %v754
        %v1018 = vunpack.c.l.b16 %v755
        %v1019 = vunpack.c.l.b16 %v756
        %v1020 = vunpack.c.l.b16 %v757
        %v1021 = vunpack.c.l.b16 %v758
        %v1022 = vunpack.c.l.b16 %v759
        %v1023 = vunpack.c.l.b16 %v760
        %v1024 = vunpack.c.l.b16 %v761
        %v1025 = vunpack.c.l.b16 %v762
        %v1026 = vunpack.c.l.b16 %v763
        %v1027 = vunpack.c.l.b16 %v764
        %v1028 = vunpack.c.l.b16 %v765
        %v1029 = vunpack.c.l.b16 %v766
        %v1030 = vunpack.c.l.b16 %v767
        %v1031 = vunpack.c.l.b16 %v768
        %v1032 = vunpack.c.l.b16 %v769
        %v1033 = vunpack.c.l.b16 %v770
        %v1034 = vunpack.c.l.b16 %v771
        %v1035 = vunpack.c.l.b16 %v772
        %v1036 = vunpack.c.l.b16 %v773
        %v1037 = vunpack.c.l.b16 %v774
        %v1038 = vunpack.c.l.b16 %v775
        %v1039 = vunpack.c.l.b16 %v776
        %v1040 = vunpack.c.l.b16 %v777
        %v1041 = vunpack.c.l.b16 %v778
        %v1042 = vunpack.c.l.b16 %v779
        %v1043 = vunpack.c.l.b16 %v780
        %v1044 = vunpack.c.l.b16 %v781
        %v1045 = vunpack.c.l.b16 %v782
        %v1046 = vunpack.c.l.b16 %v783
        %v1047 = vunpack.c.l.b16 %v784
        %v1048 = vunpack.c.l.b16 %v785
        %v1049 = vunpack.c.l.b16 %v786
        %v1050 = vunpack.c.l.b16 %v787
        %v1051 = vunpack.c.l.b16 %v788
        %v1052 = vunpack.c.l.b16 %v789
        %v1053 = vunpack.c.l.b16 %v790
        %v1054 = vunpack.c.l.b16 %v791
        %v1055 = vunpack.c.l.b16 %v792
        %v1056 = vunpack.c.l.b16 %v793
        %v1057 = vunpack.c.l.b16 %v794
        %v1058 = vunpack.c.l.b16 %v795
        %v1059 = vunpack.c.l.b16 %v796
        %v1060 = vunpack.c.l.b16 %v797
        %v1061 = vunpack.c.l.b16 %v798
        %v1062 = vunpack.c.l.b16 %v799
        %v1063 = vunpack.c.l.b16 %v800
        %v1064 = vunpack.c.l.b16 %v801
        %v1065 = vunpack.c.l.b16 %v802
        %v1066 = vunpack.c.l.b16 %v803
        %v1067 = vunpack.c.l.b16 %v804
        %v1068 = vunpack.c.l.b16 %v805
        %v1069 = vunpack.c.l.b16 %v806
        %v1070 = vunpack.c.l.b16 %v807
        %v1071 = vunpack.c.l.b16 %v808
        %v1072 = vunpack.c.l.b16 %v809
        %v1073 = vunpack.c.l.b16 %v810
        %v1074 = vunpack.c.l.b16 %v811
        %v1075 = vunpack.c.l.b16 %v812
        %v1076 = vunpack.c.l.b16 %v813
        %v1077 = vunpack.c.l.b16 %v814
        %v1078 = vunpack.c.l.b16 %v815
        %v1079 = vpack.c.b16 %v952, %v951
        %v1080 = vpack.c.b16 %v954, %v953
        %v1081 = vpack.c.b16 %v956, %v955
        %v1082 = vpack.c.b16 %v958, %v957
        %v1083 = vpack.c.b16 %v960, %v959
        %v1084 = vpack.c.b16 %v962, %v961
        %v1085 = vpack.c.b16 %v964, %v963
        %v1086 = vpack.c.b16 %v966, %v965
        %v1087 = vpack.c.b16 %v968, %v967
        %v1088 = vpack.c.b16 %v970, %v969
        %v1089 = vpack.c.b16 %v972, %v971
        %v1090 = vpack.c.b16 %v974, %v973
        %v1091 = vpack.c.b16 %v976, %v975
        %v1092 = vpack.c.b16 %v978, %v977
        %v1093 = vpack.c.b16 %v980, %v979
        %v1094 = vpack.c.b16 %v982, %v981
        %v1095 = vpack.c.b16 %v984, %v983
        %v1096 = vpack.c.b16 %v986, %v985
        %v1097 = vpack.c.b16 %v988, %v987
        %v1098 = vpack.c.b16 %v990, %v989
        %v1099 = vpack.c.b16 %v992, %v991
        %v1100 = vpack.c.b16 %v994, %v993
        %v1101 = vpack.c.b16 %v996, %v995
        %v1102 = vpack.c.b16 %v998, %v997
        %v1103 = vpack.c.b16 %v1000, %v999
        %v1104 = vpack.c.b16 %v1002, %v1001
        %v1105 = vpack.c.b16 %v1004, %v1003
        %v1106 = vpack.c.b16 %v1006, %v1005
        %v1107 = vpack.c.b16 %v1008, %v1007
        %v1108 = vpack.c.b16 %v1010, %v1009
        %v1109 = vpack.c.b16 %v1012, %v1011
        %v1110 = vpack.c.b16 %v1014, %v1013
        %v1111 = vpack.c.b16 %v1016, %v1015
        %v1112 = vpack.c.b16 %v1018, %v1017
        %v1113 = vpack.c.b16 %v1020, %v1019
        %v1114 = vpack.c.b16 %v1022, %v1021
        %v1115 = vpack.c.b16 %v1024, %v1023
        %v1116 = vpack.c.b16 %v1026, %v1025
        %v1117 = vpack.c.b16 %v1028, %v1027
        %v1118 = vpack.c.b16 %v1030, %v1029
        %v1119 = vpack.c.b16 %v1032, %v1031
        %v1120 = vpack.c.b16 %v1034, %v1033
        %v1121 = vpack.c.b16 %v1036, %v1035
        %v1122 = vpack.c.b16 %v1038, %v1037
        %v1123 = vpack.c.b16 %v1040, %v1039
        %v1124 = vpack.c.b16 %v1042, %v1041
        %v1125 = vpack.c.b16 %v1044, %v1043
        %v1126 = vpack.c.b16 %v1046, %v1045
        %v1127 = vpack.c.b16 %v1048, %v1047
        %v1128 = vpack.c.b16 %v1050, %v1049
        %v1129 = vpack.c.b16 %v1052, %v1051
        %v1130 = vpack.c.b16 %v1054, %v1053
        %v1131 = vpack.c.b16 %v1056, %v1055
        %v1132 = vpack.c.b16 %v1058, %v1057
        %v1133 = vpack.c.b16 %v1060, %v1059
        %v1134 = vpack.c.b16 %v1062, %v1061
        %v1135 = vpack.c.b16 %v1064, %v1063
        %v1136 = vpack.c.b16 %v1066, %v1065
        %v1137 = vpack.c.b16 %v1068, %v1067
        %v1138 = vpack.c.b16 %v1070, %v1069
        %v1139 = vpack.c.b16 %v1072, %v1071
        %v1140 = vpack.c.b16 %v1074, %v1073
        %v1141 = vpack.c.b16 %v1076, %v1075
        %v1142 = vpack.c.b16 %v1078, %v1077
        %1207 = vmatprep.subr.bf16.mxu0 0
        %1208 = vmatpush1.bf16.msra.mxu0 %v1079
        %1209 = vmatprep.subr.bf16.mxu0 0
        %1210 = vmatpush1.bf16.msra.mxu0 %v1080
        %1211 = vmatprep.subr.bf16.mxu0 0
        %1212 = vmatpush1.bf16.msra.mxu0 %v1081
        %1213 = vmatprep.subr.bf16.mxu0 0
        %1214 = vmatpush1.bf16.msra.mxu0 %v1082
        %1215 = vmatprep.subr.bf16.mxu0 0
        %1216 = vmatpush1.bf16.msra.mxu0 %v1083
        %1217 = vmatprep.subr.bf16.mxu0 0
        %1218 = vmatpush1.bf16.msra.mxu0 %v1084
        %1219 = vmatprep.subr.bf16.mxu0 0
        %1220 = vmatpush1.bf16.msra.mxu0 %v1085
        %1221 = vmatprep.subr.bf16.mxu0 0
        %1222 = vmatpush1.bf16.msra.mxu0 %v1086
        %1223 = vmatprep.subr.bf16.mxu0 0
        %1224 = vmatpush1.bf16.msra.mxu0 %v1087
        %1225 = vmatprep.subr.bf16.mxu0 0
        %1226 = vmatpush1.bf16.msra.mxu0 %v1088
        %1227 = vmatprep.subr.bf16.mxu0 0
        %1228 = vmatpush1.bf16.msra.mxu0 %v1089
        %1229 = vmatprep.subr.bf16.mxu0 0
        %1230 = vmatpush1.bf16.msra.mxu0 %v1090
        %1231 = vmatprep.subr.bf16.mxu0 0
        %1232 = vmatpush1.bf16.msra.mxu0 %v1091
        %1233 = vmatprep.subr.bf16.mxu0 0
        %1234 = vmatpush1.bf16.msra.mxu0 %v1092
        %1235 = vmatprep.subr.bf16.mxu0 0
        %1236 = vmatpush1.bf16.msra.mxu0 %v1093
        %1237 = vmatprep.subr.bf16.mxu0 0
        %1238 = vmatpush1.bf16.msra.mxu0 %v1094
        %1239 = vmatprep.mubr.bf16.mxu0 %v561
        %1240 = vmatmul.mubr.bf16.gmra.mrb[0].mxu0 %v560
        %v1241 = vpop.f32.mrb[0].mxu0
        %v1242 = vadd.f32 %v821, %v1241
        %v1243 = vpop.f32.mrb[0].mxu0
        %v1244 = vpop.f32.mrb[0].mxu0
        %v1245 = vadd.f32 %v821, %v1244
        %v1246 = vpop.f32.mrb[0].mxu0
        %1247 = vmatprep.mubr.bf16.mxu0 %v569
        %1248 = vmatmul.mubr.bf16.gmra.mrb[0].mxu0 %v568
        %v1249 = vpop.f32.mrb[0].mxu0
        %v1250 = vadd.f32 %v821, %v1249
        %v1251 = vpop.f32.mrb[0].mxu0
        %v1252 = vpop.f32.mrb[0].mxu0
        %v1253 = vadd.f32 %v821, %v1252
        %v1254 = vpop.f32.mrb[0].mxu0
        %1255 = vmatprep.mubr.bf16.mxu0 %v577
        %1256 = vmatmul.mubr.bf16.gmra.mrb[0].mxu0 %v576
        %v1257 = vpop.f32.mrb[0].mxu0
        %v1258 = vadd.f32 %v821, %v1257
        %v1259 = vpop.f32.mrb[0].mxu0
        %v1260 = vpop.f32.mrb[0].mxu0
        %v1261 = vadd.f32 %v821, %v1260
        %v1262 = vpop.f32.mrb[0].mxu0
        %1263 = vmatprep.mubr.bf16.mxu0 %v585
        %1264 = vmatmul.mubr.bf16.gmra.mrb[0].mxu0 %v584
        %v1265 = vpop.f32.mrb[0].mxu0
        %v1266 = vadd.f32 %v821, %v1265
        %v1267 = vpop.f32.mrb[0].mxu0
        %v1268 = vpop.f32.mrb[0].mxu0
        %v1269 = vadd.f32 %v821, %v1268
        %v1270 = vpop.f32.mrb[0].mxu0
        %1271 = vmatprep.mubr.bf16.mxu0 %v593
        %1272 = vmatmul.mubr.bf16.gmra.mrb[0].mxu0 %v592
        %v1273 = vpop.f32.mrb[0].mxu0
        %v1274 = vadd.f32 %v821, %v1273
        %v1275 = vpop.f32.mrb[0].mxu0
        %v1276 = vpop.f32.mrb[0].mxu0
        %v1277 = vadd.f32 %v821, %v1276
        %v1278 = vpop.f32.mrb[0].mxu0
        %1279 = vmatprep.mubr.bf16.mxu0 %v601
        %1280 = vmatmul.mubr.bf16.gmra.mrb[0].mxu0 %v600
        %v1281 = vpop.f32.mrb[0].mxu0
        %v1282 = vadd.f32 %v821, %v1281
        %v1283 = vpop.f32.mrb[0].mxu0
        %v1284 = vpop.f32.mrb[0].mxu0
        %v1285 = vadd.f32 %v821, %v1284
        %v1286 = vpop.f32.mrb[0].mxu0
        %1287 = vmatprep.mubr.bf16.mxu0 %v609
        %1288 = vmatmul.mubr.bf16.gmra.mrb[0].mxu0 %v608
        %v1289 = vpop.f32.mrb[0].mxu0
        %v1290 = vadd.f32 %v821, %v1289
        %v1291 = vpop.f32.mrb[0].mxu0
        %v1292 = vpop.f32.mrb[0].mxu0
        %v1293 = vadd.f32 %v821, %v1292
        %v1294 = vpop.f32.mrb[0].mxu0
        %1295 = vmatprep.mubr.bf16.mxu0 %v617
        %1296 = vmatmul.mubr.bf16.gmra.mrb[0].mxu0 %v616
        %v1297 = vpop.f32.mrb[0].mxu0
        %v1298 = vadd.f32 %v821, %v1297
        %v1299 = vpop.f32.mrb[0].mxu0
        %v1300 = vpop.f32.mrb[0].mxu0
        %v1301 = vadd.f32 %v821, %v1300
        %v1302 = vpop.f32.mrb[0].mxu0
        %1303 = vmatprep.mubr.bf16.mxu0 %v625
        %1304 = vmatmul.mubr.bf16.gmra.mrb[0].mxu0 %v624
        %v1305 = vpop.f32.mrb[0].mxu0
        %v1306 = vadd.f32 %v821, %v1305
        %v1307 = vpop.f32.mrb[0].mxu0
        %v1308 = vpop.f32.mrb[0].mxu0
        %v1309 = vadd.f32 %v821, %v1308
        %v1310 = vpop.f32.mrb[0].mxu0
        %1311 = vmatprep.mubr.bf16.mxu0 %v633
        %1312 = vmatmul.mubr.bf16.gmra.mrb[0].mxu0 %v632
        %v1313 = vpop.f32.mrb[0].mxu0
        %v1314 = vadd.f32 %v821, %v1313
        %v1315 = vpop.f32.mrb[0].mxu0
        %v1316 = vpop.f32.mrb[0].mxu0
        %v1317 = vadd.f32 %v821, %v1316
        %v1318 = vpop.f32.mrb[0].mxu0
        %1319 = vmatprep.mubr.bf16.mxu0 %v641
        %1320 = vmatmul.mubr.bf16.gmra.mrb[0].mxu0 %v640
        %v1321 = vpop.f32.mrb[0].mxu0
        %v1322 = vadd.f32 %v821, %v1321
        %v1323 = vpop.f32.mrb[0].mxu0
        %v1324 = vpop.f32.mrb[0].mxu0
        %v1325 = vadd.f32 %v821, %v1324
        %v1326 = vpop.f32.mrb[0].mxu0
        %1327 = vmatprep.mubr.bf16.mxu0 %v649
        %1328 = vmatmul.mubr.bf16.gmra.mrb[0].mxu0 %v648
        %v1329 = vpop.f32.mrb[0].mxu0
        %v1330 = vadd.f32 %v821, %v1329
        %v1331 = vpop.f32.mrb[0].mxu0
        %v1332 = vpop.f32.mrb[0].mxu0
        %v1333 = vadd.f32 %v821, %v1332
        %v1334 = vpop.f32.mrb[0].mxu0
        %1335 = vmatprep.mubr.bf16.mxu0 %v657
        %1336 = vmatmul.mubr.bf16.gmra.mrb[0].mxu0 %v656
        %v1337 = vpop.f32.mrb[0].mxu0
        %v1338 = vadd.f32 %v821, %v1337
        %v1339 = vpop.f32.mrb[0].mxu0
        %v1340 = vpop.f32.mrb[0].mxu0
        %v1341 = vadd.f32 %v821, %v1340
        %v1342 = vpop.f32.mrb[0].mxu0
        %1343 = vmatprep.mubr.bf16.mxu0 %v665
        %1344 = vmatmul.mubr.bf16.gmra.mrb[0].mxu0 %v664
        %v1345 = vpop.f32.mrb[0].mxu0
        %v1346 = vadd.f32 %v821, %v1345
        %v1347 = vpop.f32.mrb[0].mxu0
        %v1348 = vpop.f32.mrb[0].mxu0
        %v1349 = vadd.f32 %v821, %v1348
        %v1350 = vpop.f32.mrb[0].mxu0
        %1351 = vmatprep.mubr.bf16.mxu0 %v673
        %1352 = vmatmul.mubr.bf16.gmra.mrb[0].mxu0 %v672
        %v1353 = vpop.f32.mrb[0].mxu0
        %v1354 = vadd.f32 %v821, %v1353
        %v1355 = vpop.f32.mrb[0].mxu0
        %v1356 = vpop.f32.mrb[0].mxu0
        %v1357 = vadd.f32 %v821, %v1356
        %v1358 = vpop.f32.mrb[0].mxu0
        %1359 = vmatprep.mubr.bf16.mxu0 %v681
        %1360 = vmatmul.mubr.bf16.gmra.mrb[0].mxu0 %v680
        %v1361 = vpop.f32.mrb[0].mxu0
        %v1362 = vadd.f32 %v821, %v1361
        %v1363 = vpop.f32.mrb[0].mxu0
        %v1364 = vpop.f32.mrb[0].mxu0
        %v1365 = vadd.f32 %v821, %v1364
        %v1366 = vpop.f32.mrb[0].mxu0
        %1367 = vdwg.mxu0
        %1368 = vmatprep.subr.bf16.mxu0 0
        %1369 = vmatpush1.bf16.msra.mxu0 %v1095
        %1370 = vmatprep.subr.bf16.mxu0 0
        %1371 = vmatpush1.bf16.msra.mxu0 %v1096
        %1372 = vmatprep.subr.bf16.mxu0 0
        %1373 = vmatpush1.bf16.msra.mxu0 %v1097
        %1374 = vmatprep.subr.bf16.mxu0 0
        %1375 = vmatpush1.bf16.msra.mxu0 %v1098
        %1376 = vmatprep.subr.bf16.mxu0 0
        %1377 = vmatpush1.bf16.msra.mxu0 %v1099
        %1378 = vmatprep.subr.bf16.mxu0 0
        %1379 = vmatpush1.bf16.msra.mxu0 %v1100
        %1380 = vmatprep.subr.bf16.mxu0 0
        %1381 = vmatpush1.bf16.msra.mxu0 %v1101
        %1382 = vmatprep.subr.bf16.mxu0 0
        %1383 = vmatpush1.bf16.msra.mxu0 %v1102
        %1384 = vmatprep.subr.bf16.mxu0 0
        %1385 = vmatpush1.bf16.msra.mxu0 %v1103
        %1386 = vmatprep.subr.bf16.mxu0 0
        %1387 = vmatpush1.bf16.msra.mxu0 %v1104
        %1388 = vmatprep.subr.bf16.mxu0 0
        %1389 = vmatpush1.bf16.msra.mxu0 %v1105
        %1390 = vmatprep.subr.bf16.mxu0 0
        %1391 = vmatpush1.bf16.msra.mxu0 %v1106
        %1392 = vmatprep.subr.bf16.mxu0 0
        %1393 = vmatpush1.bf16.msra.mxu0 %v1107
        %1394 = vmatprep.subr.bf16.mxu0 0
        %1395 = vmatpush1.bf16.msra.mxu0 %v1108
        %1396 = vmatprep.subr.bf16.mxu0 0
        %1397 = vmatpush1.bf16.msra.mxu0 %v1109
        %1398 = vmatprep.subr.bf16.mxu0 0
        %1399 = vmatpush1.bf16.msra.mxu0 %v1110
        %1400 = vmatprep.mubr.bf16.mxu0 %v563
        %1401 = vmatmul.mubr.bf16.gmra.mrb[0].mxu0 %v562
        %v1402 = vpop.f32.mrb[0].mxu0
        %v1403 = vadd.f32 %v1242, %v1402
        %v1404 = vpop.f32.mrb[0].mxu0
        %v1405 = vpop.f32.mrb[0].mxu0
        %v1406 = vadd.f32 %v1245, %v1405
        %v1407 = vpop.f32.mrb[0].mxu0
        %1408 = vmatprep.mubr.bf16.mxu0 %v571
        %1409 = vmatmul.mubr.bf16.gmra.mrb[0].mxu0 %v570
        %v1410 = vpop.f32.mrb[0].mxu0
        %v1411 = vadd.f32 %v1250, %v1410
        %v1412 = vpop.f32.mrb[0].mxu0
        %v1413 = vpop.f32.mrb[0].mxu0
        %v1414 = vadd.f32 %v1253, %v1413
        %v1415 = vpop.f32.mrb[0].mxu0
        %1416 = vmatprep.mubr.bf16.mxu0 %v579
        %1417 = vmatmul.mubr.bf16.gmra.mrb[0].mxu0 %v578
        %v1418 = vpop.f32.mrb[0].mxu0
        %v1419 = vadd.f32 %v1258, %v1418
        %v1420 = vpop.f32.mrb[0].mxu0
        %v1421 = vpop.f32.mrb[0].mxu0
        %v1422 = vadd.f32 %v1261, %v1421
        %v1423 = vpop.f32.mrb[0].mxu0
        %1424 = vmatprep.mubr.bf16.mxu0 %v587
        %1425 = vmatmul.mubr.bf16.gmra.mrb[0].mxu0 %v586
        %v1426 = vpop.f32.mrb[0].mxu0
        %v1427 = vadd.f32 %v1266, %v1426
        %v1428 = vpop.f32.mrb[0].mxu0
        %v1429 = vpop.f32.mrb[0].mxu0
        %v1430 = vadd.f32 %v1269, %v1429
        %v1431 = vpop.f32.mrb[0].mxu0
        %1432 = vmatprep.mubr.bf16.mxu0 %v595
        %1433 = vmatmul.mubr.bf16.gmra.mrb[0].mxu0 %v594
        %v1434 = vpop.f32.mrb[0].mxu0
        %v1435 = vadd.f32 %v1274, %v1434
        %v1436 = vpop.f32.mrb[0].mxu0
        %v1437 = vpop.f32.mrb[0].mxu0
        %v1438 = vadd.f32 %v1277, %v1437
        %v1439 = vpop.f32.mrb[0].mxu0
        %1440 = vmatprep.mubr.bf16.mxu0 %v603
        %1441 = vmatmul.mubr.bf16.gmra.mrb[0].mxu0 %v602
        %v1442 = vpop.f32.mrb[0].mxu0
        %v1443 = vadd.f32 %v1282, %v1442
        %v1444 = vpop.f32.mrb[0].mxu0
        %v1445 = vpop.f32.mrb[0].mxu0
        %v1446 = vadd.f32 %v1285, %v1445
        %v1447 = vpop.f32.mrb[0].mxu0
        %1448 = vmatprep.mubr.bf16.mxu0 %v611
        %1449 = vmatmul.mubr.bf16.gmra.mrb[0].mxu0 %v610
        %v1450 = vpop.f32.mrb[0].mxu0
        %v1451 = vadd.f32 %v1290, %v1450
        %v1452 = vpop.f32.mrb[0].mxu0
        %v1453 = vpop.f32.mrb[0].mxu0
        %v1454 = vadd.f32 %v1293, %v1453
        %v1455 = vpop.f32.mrb[0].mxu0
        %1456 = vmatprep.mubr.bf16.mxu0 %v619
        %1457 = vmatmul.mubr.bf16.gmra.mrb[0].mxu0 %v618
        %v1458 = vpop.f32.mrb[0].mxu0
        %v1459 = vadd.f32 %v1298, %v1458
        %v1460 = vpop.f32.mrb[0].mxu0
        %v1461 = vpop.f32.mrb[0].mxu0
        %v1462 = vadd.f32 %v1301, %v1461
        %v1463 = vpop.f32.mrb[0].mxu0
        %1464 = vmatprep.mubr.bf16.mxu0 %v627
        %1465 = vmatmul.mubr.bf16.gmra.mrb[0].mxu0 %v626
        %v1466 = vpop.f32.mrb[0].mxu0
        %v1467 = vadd.f32 %v1306, %v1466
        %v1468 = vpop.f32.mrb[0].mxu0
        %v1469 = vpop.f32.mrb[0].mxu0
        %v1470 = vadd.f32 %v1309, %v1469
        %v1471 = vpop.f32.mrb[0].mxu0
        %1472 = vmatprep.mubr.bf16.mxu0 %v635
        %1473 = vmatmul.mubr.bf16.gmra.mrb[0].mxu0 %v634
        %v1474 = vpop.f32.mrb[0].mxu0
        %v1475 = vadd.f32 %v1314, %v1474
        %v1476 = vpop.f32.mrb[0].mxu0
        %v1477 = vpop.f32.mrb[0].mxu0
        %v1478 = vadd.f32 %v1317, %v1477
        %v1479 = vpop.f32.mrb[0].mxu0
        %1480 = vmatprep.mubr.bf16.mxu0 %v643
        %1481 = vmatmul.mubr.bf16.gmra.mrb[0].mxu0 %v642
        %v1482 = vpop.f32.mrb[0].mxu0
        %v1483 = vadd.f32 %v1322, %v1482
        %v1484 = vpop.f32.mrb[0].mxu0
        %v1485 = vpop.f32.mrb[0].mxu0
        %v1486 = vadd.f32 %v1325, %v1485
        %v1487 = vpop.f32.mrb[0].mxu0
        %1488 = vmatprep.mubr.bf16.mxu0 %v651
        %1489 = vmatmul.mubr.bf16.gmra.mrb[0].mxu0 %v650
        %v1490 = vpop.f32.mrb[0].mxu0
        %v1491 = vadd.f32 %v1330, %v1490
        %v1492 = vpop.f32.mrb[0].mxu0
        %v1493 = vpop.f32.mrb[0].mxu0
        %v1494 = vadd.f32 %v1333, %v1493
        %v1495 = vpop.f32.mrb[0].mxu0
        %1496 = vmatprep.mubr.bf16.mxu0 %v659
        %1497 = vmatmul.mubr.bf16.gmra.mrb[0].mxu0 %v658
        %v1498 = vpop.f32.mrb[0].mxu0
        %v1499 = vadd.f32 %v1338, %v1498
        %v1500 = vpop.f32.mrb[0].mxu0
        %v1501 = vpop.f32.mrb[0].mxu0
        %v1502 = vadd.f32 %v1341, %v1501
        %v1503 = vpop.f32.mrb[0].mxu0
        %1504 = vmatprep.mubr.bf16.mxu0 %v667
        %1505 = vmatmul.mubr.bf16.gmra.mrb[0].mxu0 %v666
        %v1506 = vpop.f32.mrb[0].mxu0
        %v1507 = vadd.f32 %v1346, %v1506
        %v1508 = vpop.f32.mrb[0].mxu0
        %v1509 = vpop.f32.mrb[0].mxu0
        %v1510 = vadd.f32 %v1349, %v1509
        %v1511 = vpop.f32.mrb[0].mxu0
        %1512 = vmatprep.mubr.bf16.mxu0 %v675
        %1513 = vmatmul.mubr.bf16.gmra.mrb[0].mxu0 %v674
        %v1514 = vpop.f32.mrb[0].mxu0
        %v1515 = vadd.f32 %v1354, %v1514
        %v1516 = vpop.f32.mrb[0].mxu0
        %v1517 = vpop.f32.mrb[0].mxu0
        %v1518 = vadd.f32 %v1357, %v1517
        %v1519 = vpop.f32.mrb[0].mxu0
        %1520 = vmatprep.mubr.bf16.mxu0 %v683
        %1521 = vmatmul.mubr.bf16.gmra.mrb[0].mxu0 %v682
        %v1522 = vpop.f32.mrb[0].mxu0
        %v1523 = vadd.f32 %v1362, %v1522
        %v1524 = vpop.f32.mrb[0].mxu0
        %v1525 = vpop.f32.mrb[0].mxu0
        %v1526 = vadd.f32 %v1365, %v1525
        %v1527 = vpop.f32.mrb[0].mxu0
        %1528 = vdwg.mxu0
        %1529 = vmatprep.subr.bf16.mxu0 0
        %1530 = vmatpush1.bf16.msra.mxu0 %v1111
        %1531 = vmatprep.subr.bf16.mxu0 0
        %1532 = vmatpush1.bf16.msra.mxu0 %v1112
        %1533 = vmatprep.subr.bf16.mxu0 0
        %1534 = vmatpush1.bf16.msra.mxu0 %v1113
        %1535 = vmatprep.subr.bf16.mxu0 0
        %1536 = vmatpush1.bf16.msra.mxu0 %v1114
        %1537 = vmatprep.subr.bf16.mxu0 0
        %1538 = vmatpush1.bf16.msra.mxu0 %v1115
        %1539 = vmatprep.subr.bf16.mxu0 0
        %1540 = vmatpush1.bf16.msra.mxu0 %v1116
        %1541 = vmatprep.subr.bf16.mxu0 0
        %1542 = vmatpush1.bf16.msra.mxu0 %v1117
        %1543 = vmatprep.subr.bf16.mxu0 0
        %1544 = vmatpush1.bf16.msra.mxu0 %v1118
        %1545 = vmatprep.subr.bf16.mxu0 0
        %1546 = vmatpush1.bf16.msra.mxu0 %v1119
        %1547 = vmatprep.subr.bf16.mxu0 0
        %1548 = vmatpush1.bf16.msra.mxu0 %v1120
        %1549 = vmatprep.subr.bf16.mxu0 0
        %1550 = vmatpush1.bf16.msra.mxu0 %v1121
        %1551 = vmatprep.subr.bf16.mxu0 0
        %1552 = vmatpush1.bf16.msra.mxu0 %v1122
        %1553 = vmatprep.subr.bf16.mxu0 0
        %1554 = vmatpush1.bf16.msra.mxu0 %v1123
        %1555 = vmatprep.subr.bf16.mxu0 0
        %1556 = vmatpush1.bf16.msra.mxu0 %v1124
        %1557 = vmatprep.subr.bf16.mxu0 0
        %1558 = vmatpush1.bf16.msra.mxu0 %v1125
        %1559 = vmatprep.subr.bf16.mxu0 0
        %1560 = vmatpush1.bf16.msra.mxu0 %v1126
        %1561 = vmatprep.mubr.bf16.mxu0 %v565
        %1562 = vmatmul.mubr.bf16.gmra.mrb[0].mxu0 %v564
        %v1563 = vpop.f32.mrb[0].mxu0
        %v1564 = vadd.f32 %v1403, %v1563
        %v1565 = vpop.f32.mrb[0].mxu0
        %v1566 = vpop.f32.mrb[0].mxu0
        %v1567 = vadd.f32 %v1406, %v1566
        %v1568 = vpop.f32.mrb[0].mxu0
        %1569 = vmatprep.mubr.bf16.mxu0 %v573
        %1570 = vmatmul.mubr.bf16.gmra.mrb[0].mxu0 %v572
        %v1571 = vpop.f32.mrb[0].mxu0
        %v1572 = vadd.f32 %v1411, %v1571
        %v1573 = vpop.f32.mrb[0].mxu0
        %v1574 = vpop.f32.mrb[0].mxu0
        %v1575 = vadd.f32 %v1414, %v1574
        %v1576 = vpop.f32.mrb[0].mxu0
        %1577 = vmatprep.mubr.bf16.mxu0 %v581
        %1578 = vmatmul.mubr.bf16.gmra.mrb[0].mxu0 %v580
        %v1579 = vpop.f32.mrb[0].mxu0
        %v1580 = vadd.f32 %v1419, %v1579
        %v1581 = vpop.f32.mrb[0].mxu0
        %v1582 = vpop.f32.mrb[0].mxu0
        %v1583 = vadd.f32 %v1422, %v1582
        %v1584 = vpop.f32.mrb[0].mxu0
        %1585 = vmatprep.mubr.bf16.mxu0 %v589
        %1586 = vmatmul.mubr.bf16.gmra.mrb[0].mxu0 %v588
        %v1587 = vpop.f32.mrb[0].mxu0
        %v1588 = vadd.f32 %v1427, %v1587
        %v1589 = vpop.f32.mrb[0].mxu0
        %v1590 = vpop.f32.mrb[0].mxu0
        %v1591 = vadd.f32 %v1430, %v1590
        %v1592 = vpop.f32.mrb[0].mxu0
        %1593 = vmatprep.mubr.bf16.mxu0 %v597
        %1594 = vmatmul.mubr.bf16.gmra.mrb[0].mxu0 %v596
        %v1595 = vpop.f32.mrb[0].mxu0
        %v1596 = vadd.f32 %v1435, %v1595
        %v1597 = vpop.f32.mrb[0].mxu0
        %v1598 = vpop.f32.mrb[0].mxu0
        %v1599 = vadd.f32 %v1438, %v1598
        %v1600 = vpop.f32.mrb[0].mxu0
        %1601 = vmatprep.mubr.bf16.mxu0 %v605
        %1602 = vmatmul.mubr.bf16.gmra.mrb[0].mxu0 %v604
        %v1603 = vpop.f32.mrb[0].mxu0
        %v1604 = vadd.f32 %v1443, %v1603
        %v1605 = vpop.f32.mrb[0].mxu0
        %v1606 = vpop.f32.mrb[0].mxu0
        %v1607 = vadd.f32 %v1446, %v1606
        %v1608 = vpop.f32.mrb[0].mxu0
        %1609 = vmatprep.mubr.bf16.mxu0 %v613
        %1610 = vmatmul.mubr.bf16.gmra.mrb[0].mxu0 %v612
        %v1611 = vpop.f32.mrb[0].mxu0
        %v1612 = vadd.f32 %v1451, %v1611
        %v1613 = vpop.f32.mrb[0].mxu0
        %v1614 = vpop.f32.mrb[0].mxu0
        %v1615 = vadd.f32 %v1454, %v1614
        %v1616 = vpop.f32.mrb[0].mxu0
        %1617 = vmatprep.mubr.bf16.mxu0 %v621
        %1618 = vmatmul.mubr.bf16.gmra.mrb[0].mxu0 %v620
        %v1619 = vpop.f32.mrb[0].mxu0
        %v1620 = vadd.f32 %v1459, %v1619
        %v1621 = vpop.f32.mrb[0].mxu0
        %v1622 = vpop.f32.mrb[0].mxu0
        %v1623 = vadd.f32 %v1462, %v1622
        %v1624 = vpop.f32.mrb[0].mxu0
        %1625 = vmatprep.mubr.bf16.mxu0 %v629
        %1626 = vmatmul.mubr.bf16.gmra.mrb[0].mxu0 %v628
        %v1627 = vpop.f32.mrb[0].mxu0
        %v1628 = vadd.f32 %v1467, %v1627
        %v1629 = vpop.f32.mrb[0].mxu0
        %v1630 = vpop.f32.mrb[0].mxu0
        %v1631 = vadd.f32 %v1470, %v1630
        %v1632 = vpop.f32.mrb[0].mxu0
        %1633 = vmatprep.mubr.bf16.mxu0 %v637
        %1634 = vmatmul.mubr.bf16.gmra.mrb[0].mxu0 %v636
        %v1635 = vpop.f32.mrb[0].mxu0
        %v1636 = vadd.f32 %v1475, %v1635
        %v1637 = vpop.f32.mrb[0].mxu0
        %v1638 = vpop.f32.mrb[0].mxu0
        %v1639 = vadd.f32 %v1478, %v1638
        %v1640 = vpop.f32.mrb[0].mxu0
        %1641 = vmatprep.mubr.bf16.mxu0 %v645
        %1642 = vmatmul.mubr.bf16.gmra.mrb[0].mxu0 %v644
        %v1643 = vpop.f32.mrb[0].mxu0
        %v1644 = vadd.f32 %v1483, %v1643
        %v1645 = vpop.f32.mrb[0].mxu0
        %v1646 = vpop.f32.mrb[0].mxu0
        %v1647 = vadd.f32 %v1486, %v1646
        %v1648 = vpop.f32.mrb[0].mxu0
        %1649 = vmatprep.mubr.bf16.mxu0 %v653
        %1650 = vmatmul.mubr.bf16.gmra.mrb[0].mxu0 %v652
        %v1651 = vpop.f32.mrb[0].mxu0
        %v1652 = vadd.f32 %v1491, %v1651
        %v1653 = vpop.f32.mrb[0].mxu0
        %v1654 = vpop.f32.mrb[0].mxu0
        %v1655 = vadd.f32 %v1494, %v1654
        %v1656 = vpop.f32.mrb[0].mxu0
        %1657 = vmatprep.mubr.bf16.mxu0 %v661
        %1658 = vmatmul.mubr.bf16.gmra.mrb[0].mxu0 %v660
        %v1659 = vpop.f32.mrb[0].mxu0
        %v1660 = vadd.f32 %v1499, %v1659
        %v1661 = vpop.f32.mrb[0].mxu0
        %v1662 = vpop.f32.mrb[0].mxu0
        %v1663 = vadd.f32 %v1502, %v1662
        %v1664 = vpop.f32.mrb[0].mxu0
        %1665 = vmatprep.mubr.bf16.mxu0 %v669
        %1666 = vmatmul.mubr.bf16.gmra.mrb[0].mxu0 %v668
        %v1667 = vpop.f32.mrb[0].mxu0
        %v1668 = vadd.f32 %v1507, %v1667
        %v1669 = vpop.f32.mrb[0].mxu0
        %v1670 = vpop.f32.mrb[0].mxu0
        %v1671 = vadd.f32 %v1510, %v1670
        %v1672 = vpop.f32.mrb[0].mxu0
        %1673 = vmatprep.mubr.bf16.mxu0 %v677
        %1674 = vmatmul.mubr.bf16.gmra.mrb[0].mxu0 %v676
        %v1675 = vpop.f32.mrb[0].mxu0
        %v1676 = vadd.f32 %v1515, %v1675
        %v1677 = vpop.f32.mrb[0].mxu0
        %v1678 = vpop.f32.mrb[0].mxu0
        %v1679 = vadd.f32 %v1518, %v1678
        %v1680 = vpop.f32.mrb[0].mxu0
        %1681 = vmatprep.mubr.bf16.mxu0 %v685
        %1682 = vmatmul.mubr.bf16.gmra.mrb[0].mxu0 %v684
        %v1683 = vpop.f32.mrb[0].mxu0
        %v1684 = vadd.f32 %v1523, %v1683
        %v1685 = vpop.f32.mrb[0].mxu0
        %v1686 = vpop.f32.mrb[0].mxu0
        %v1687 = vadd.f32 %v1526, %v1686
        %v1688 = vpop.f32.mrb[0].mxu0
        %1689 = vdwg.mxu0
        %1690 = vmatprep.subr.bf16.mxu0 0
        %1691 = vmatpush1.bf16.msra.mxu0 %v1127
        %1692 = vmatprep.subr.bf16.mxu0 0
        %1693 = vmatpush1.bf16.msra.mxu0 %v1128
        %1694 = vmatprep.subr.bf16.mxu0 0
        %1695 = vmatpush1.bf16.msra.mxu0 %v1129
        %1696 = vmatprep.subr.bf16.mxu0 0
        %1697 = vmatpush1.bf16.msra.mxu0 %v1130
        %1698 = vmatprep.subr.bf16.mxu0 0
        %1699 = vmatpush1.bf16.msra.mxu0 %v1131
        %1700 = vmatprep.subr.bf16.mxu0 0
        %1701 = vmatpush1.bf16.msra.mxu0 %v1132
        %1702 = vmatprep.subr.bf16.mxu0 0
        %1703 = vmatpush1.bf16.msra.mxu0 %v1133
        %1704 = vmatprep.subr.bf16.mxu0 0
        %1705 = vmatpush1.bf16.msra.mxu0 %v1134
        %1706 = vmatprep.subr.bf16.mxu0 0
        %1707 = vmatpush1.bf16.msra.mxu0 %v1135
        %1708 = vmatprep.subr.bf16.mxu0 0
        %1709 = vmatpush1.bf16.msra.mxu0 %v1136
        %1710 = vmatprep.subr.bf16.mxu0 0
        %1711 = vmatpush1.bf16.msra.mxu0 %v1137
        %1712 = vmatprep.subr.bf16.mxu0 0
        %1713 = vmatpush1.bf16.msra.mxu0 %v1138
        %1714 = vmatprep.subr.bf16.mxu0 0
        %1715 = vmatpush1.bf16.msra.mxu0 %v1139
        %1716 = vmatprep.subr.bf16.mxu0 0
        %1717 = vmatpush1.bf16.msra.mxu0 %v1140
        %1718 = vmatprep.subr.bf16.mxu0 0
        %1719 = vmatpush1.bf16.msra.mxu0 %v1141
        %1720 = vmatprep.subr.bf16.mxu0 0
        %1721 = vmatpush1.bf16.msra.mxu0 %v1142
        %1722 = vmatprep.mubr.bf16.mxu0 %v567
        %1723 = vmatmul.mubr.bf16.gmra.mrb[0].mxu0 %v566
        %v1724 = vpop.f32.mrb[0].mxu0
        %v1725 = vadd.f32 %v1564, %v1724
        %v1726 = vpop.f32.mrb[0].mxu0
        %v1727 = vpop.f32.mrb[0].mxu0
        %v1728 = vadd.f32 %v1567, %v1727
        %v1729 = vpop.f32.mrb[0].mxu0
        %1730 = vmatprep.mubr.bf16.mxu0 %v575
        %1731 = vmatmul.mubr.bf16.gmra.mrb[0].mxu0 %v574
        %v1732 = vpop.f32.mrb[0].mxu0
        %v1733 = vadd.f32 %v1572, %v1732
        %v1734 = vpop.f32.mrb[0].mxu0
        %v1735 = vpop.f32.mrb[0].mxu0
        %v1736 = vadd.f32 %v1575, %v1735
        %v1737 = vpop.f32.mrb[0].mxu0
        %1738 = vmatprep.mubr.bf16.mxu0 %v583
        %1739 = vmatmul.mubr.bf16.gmra.mrb[0].mxu0 %v582
        %v1740 = vpop.f32.mrb[0].mxu0
        %v1741 = vadd.f32 %v1580, %v1740
        %v1742 = vpop.f32.mrb[0].mxu0
        %v1743 = vpop.f32.mrb[0].mxu0
        %v1744 = vadd.f32 %v1583, %v1743
        %v1745 = vpop.f32.mrb[0].mxu0
        %1746 = vmatprep.mubr.bf16.mxu0 %v591
        %1747 = vmatmul.mubr.bf16.gmra.mrb[0].mxu0 %v590
        %v1748 = vpop.f32.mrb[0].mxu0
        %v1749 = vadd.f32 %v1588, %v1748
        %v1750 = vpop.f32.mrb[0].mxu0
        %v1751 = vpop.f32.mrb[0].mxu0
        %v1752 = vadd.f32 %v1591, %v1751
        %v1753 = vpop.f32.mrb[0].mxu0
        %1754 = vmatprep.mubr.bf16.mxu0 %v599
        %1755 = vmatmul.mubr.bf16.gmra.mrb[0].mxu0 %v598
        %v1756 = vpop.f32.mrb[0].mxu0
        %v1757 = vadd.f32 %v1596, %v1756
        %v1758 = vpop.f32.mrb[0].mxu0
        %v1759 = vpop.f32.mrb[0].mxu0
        %v1760 = vadd.f32 %v1599, %v1759
        %v1761 = vpop.f32.mrb[0].mxu0
        %1762 = vmatprep.mubr.bf16.mxu0 %v607
        %1763 = vmatmul.mubr.bf16.gmra.mrb[0].mxu0 %v606
        %v1764 = vpop.f32.mrb[0].mxu0
        %v1765 = vadd.f32 %v1604, %v1764
        %v1766 = vpop.f32.mrb[0].mxu0
        %v1767 = vpop.f32.mrb[0].mxu0
        %v1768 = vadd.f32 %v1607, %v1767
        %v1769 = vpop.f32.mrb[0].mxu0
        %1770 = vmatprep.mubr.bf16.mxu0 %v615
        %1771 = vmatmul.mubr.bf16.gmra.mrb[0].mxu0 %v614
        %v1772 = vpop.f32.mrb[0].mxu0
        %v1773 = vadd.f32 %v1612, %v1772
        %v1774 = vpop.f32.mrb[0].mxu0
        %v1775 = vpop.f32.mrb[0].mxu0
        %v1776 = vadd.f32 %v1615, %v1775
        %v1777 = vpop.f32.mrb[0].mxu0
        %1778 = vmatprep.mubr.bf16.mxu0 %v623
        %1779 = vmatmul.mubr.bf16.gmra.mrb[0].mxu0 %v622
        %v1780 = vpop.f32.mrb[0].mxu0
        %v1781 = vadd.f32 %v1620, %v1780
        %v1782 = vpop.f32.mrb[0].mxu0
        %v1783 = vpop.f32.mrb[0].mxu0
        %v1784 = vadd.f32 %v1623, %v1783
        %v1785 = vpop.f32.mrb[0].mxu0
        %1786 = vmatprep.mubr.bf16.mxu0 %v631
        %1787 = vmatmul.mubr.bf16.gmra.mrb[0].mxu0 %v630
        %v1788 = vpop.f32.mrb[0].mxu0
        %v1789 = vadd.f32 %v1628, %v1788
        %v1790 = vpop.f32.mrb[0].mxu0
        %v1791 = vpop.f32.mrb[0].mxu0
        %v1792 = vadd.f32 %v1631, %v1791
        %v1793 = vpop.f32.mrb[0].mxu0
        %1794 = vmatprep.mubr.bf16.mxu0 %v639
        %1795 = vmatmul.mubr.bf16.gmra.mrb[0].mxu0 %v638
        %v1796 = vpop.f32.mrb[0].mxu0
        %v1797 = vadd.f32 %v1636, %v1796
        %v1798 = vpop.f32.mrb[0].mxu0
        %v1799 = vpop.f32.mrb[0].mxu0
        %v1800 = vadd.f32 %v1639, %v1799
        %v1801 = vpop.f32.mrb[0].mxu0
        %1802 = vmatprep.mubr.bf16.mxu0 %v647
        %1803 = vmatmul.mubr.bf16.gmra.mrb[0].mxu0 %v646
        %v1804 = vpop.f32.mrb[0].mxu0
        %v1805 = vadd.f32 %v1644, %v1804
        %v1806 = vpop.f32.mrb[0].mxu0
        %v1807 = vpop.f32.mrb[0].mxu0
        %v1808 = vadd.f32 %v1647, %v1807
        %v1809 = vpop.f32.mrb[0].mxu0
        %1810 = vmatprep.mubr.bf16.mxu0 %v655
        %1811 = vmatmul.mubr.bf16.gmra.mrb[0].mxu0 %v654
        %v1812 = vpop.f32.mrb[0].mxu0
        %v1813 = vadd.f32 %v1652, %v1812
        %v1814 = vpop.f32.mrb[0].mxu0
        %v1815 = vpop.f32.mrb[0].mxu0
        %v1816 = vadd.f32 %v1655, %v1815
        %v1817 = vpop.f32.mrb[0].mxu0
        %1818 = vmatprep.mubr.bf16.mxu0 %v663
        %1819 = vmatmul.mubr.bf16.gmra.mrb[0].mxu0 %v662
        %v1820 = vpop.f32.mrb[0].mxu0
        %v1821 = vadd.f32 %v1660, %v1820
        %v1822 = vpop.f32.mrb[0].mxu0
        %v1823 = vpop.f32.mrb[0].mxu0
        %v1824 = vadd.f32 %v1663, %v1823
        %v1825 = vpop.f32.mrb[0].mxu0
        %1826 = vmatprep.mubr.bf16.mxu0 %v671
        %1827 = vmatmul.mubr.bf16.gmra.mrb[0].mxu0 %v670
        %v1828 = vpop.f32.mrb[0].mxu0
        %v1829 = vadd.f32 %v1668, %v1828
        %v1830 = vpop.f32.mrb[0].mxu0
        %v1831 = vpop.f32.mrb[0].mxu0
        %v1832 = vadd.f32 %v1671, %v1831
        %v1833 = vpop.f32.mrb[0].mxu0
        %1834 = vmatprep.mubr.bf16.mxu0 %v679
        %1835 = vmatmul.mubr.bf16.gmra.mrb[0].mxu0 %v678
        %v1836 = vpop.f32.mrb[0].mxu0
        %v1837 = vadd.f32 %v1676, %v1836
        %v1838 = vpop.f32.mrb[0].mxu0
        %v1839 = vpop.f32.mrb[0].mxu0
        %v1840 = vadd.f32 %v1679, %v1839
        %v1841 = vpop.f32.mrb[0].mxu0
        %1842 = vmatprep.mubr.bf16.mxu0 %v687
        %1843 = vmatmul.mubr.bf16.gmra.mrb[0].mxu0 %v686
        %v1844 = vpop.f32.mrb[0].mxu0
        %v1845 = vadd.f32 %v1684, %v1844
        %v1846 = vpop.f32.mrb[0].mxu0
        %v1847 = vpop.f32.mrb[0].mxu0
        %v1848 = vadd.f32 %v1687, %v1847
        %v1849 = vpop.f32.mrb[0].mxu0
        %1850 = vdwg.mxu0
        %v1851 = vmax.f32 %v1725, 0.0
        %v1852 = vmax.f32 %v1728, 0.0
        %v1853 = vmax.f32 %v1733, 0.0
        %v1854 = vmax.f32 %v1736, 0.0
        %v1855 = vmax.f32 %v1741, 0.0
        %v1856 = vmax.f32 %v1744, 0.0
        %v1857 = vmax.f32 %v1749, 0.0
        %v1858 = vmax.f32 %v1752, 0.0
        %v1859 = vmax.f32 %v1757, 0.0
        %v1860 = vmax.f32 %v1760, 0.0
        %v1861 = vmax.f32 %v1765, 0.0
        %v1862 = vmax.f32 %v1768, 0.0
        %v1863 = vmax.f32 %v1773, 0.0
        %v1864 = vmax.f32 %v1776, 0.0
        %v1865 = vmax.f32 %v1781, 0.0
        %v1866 = vmax.f32 %v1784, 0.0
        %v1867 = vmax.f32 %v1789, 0.0
        %v1868 = vmax.f32 %v1792, 0.0
        %v1869 = vmax.f32 %v1797, 0.0
        %v1870 = vmax.f32 %v1800, 0.0
        %v1871 = vmax.f32 %v1805, 0.0
        %v1872 = vmax.f32 %v1808, 0.0
        %v1873 = vmax.f32 %v1813, 0.0
        %v1874 = vmax.f32 %v1816, 0.0
        %v1875 = vmax.f32 %v1821, 0.0
        %v1876 = vmax.f32 %v1824, 0.0
        %v1877 = vmax.f32 %v1829, 0.0
        %v1878 = vmax.f32 %v1832, 0.0
        %v1879 = vmax.f32 %v1837, 0.0
        %v1880 = vmax.f32 %v1840, 0.0
        %v1881 = vmax.f32 %v1845, 0.0
        %v1882 = vmax.f32 %v1848, 0.0
        %v1883 = vld [vmem:[#allocation9] sm:$0x1]
        %s1884 = sld [smem:[#allocation2]]
        %v1885 = vstv %s1884
        %1886 = vmatprep.subr.mxu0 0.0
        %1887 = vmatpush1.xpose.msra.mxu0 %v1851
        %1888 = vmatprep.subr.mxu0 0.0
        %1889 = vmatpush1.xpose.msra.mxu0 %v1852
        %1890 = vmatprep.subr.mxu0 0.0
        %1891 = vmatpush1.xpose.msra.mxu0 %v1853
        %1892 = vmatprep.subr.mxu0 0.0
        %1893 = vmatpush1.xpose.msra.mxu0 %v1854
        %1894 = vmatprep.subr.mxu0 0.0
        %1895 = vmatpush1.xpose.msra.mxu0 %v1855
        %1896 = vmatprep.subr.mxu0 0.0
        %1897 = vmatpush1.xpose.msra.mxu0 %v1856
        %1898 = vmatprep.subr.mxu0 0.0
        %1899 = vmatpush1.xpose.msra.mxu0 %v1857
        %1900 = vmatprep.subr.mxu0 0.0
        %1901 = vmatpush1.xpose.msra.mxu0 %v1858
        %1902 = vmatprep.subr.mxu0 0.0
        %1903 = vmatpush1.xpose.msra.mxu0 %v1859
        %1904 = vmatprep.subr.mxu0 0.0
        %1905 = vmatpush1.xpose.msra.mxu0 %v1860
        %1906 = vmatprep.subr.mxu0 0.0
        %1907 = vmatpush1.xpose.msra.mxu0 %v1861
        %1908 = vmatprep.subr.mxu0 0.0
        %1909 = vmatpush1.xpose.msra.mxu0 %v1862
        %1910 = vmatprep.subr.mxu0 0.0
        %1911 = vmatpush1.xpose.msra.mxu0 %v1863
        %1912 = vmatprep.subr.mxu0 0.0
        %1913 = vmatpush1.xpose.msra.mxu0 %v1864
        %1914 = vmatprep.subr.mxu0 0.0
        %1915 = vmatpush1.xpose.msra.mxu0 %v1865
        %1916 = vmatprep.subr.mxu0 0.0
        %1917 = vmatpush1.xpose.msra.mxu0 %v1866
        %1918 = vmatprep.subr.mxu0 0.0
        %1919 = vmatpush1.xpose.msra.mxu0 %v1867
        %1920 = vmatprep.subr.mxu0 0.0
        %1921 = vmatpush1.xpose.msra.mxu0 %v1868
        %1922 = vmatprep.subr.mxu0 0.0
        %1923 = vmatpush1.xpose.msra.mxu0 %v1869
        %1924 = vmatprep.subr.mxu0 0.0
        %1925 = vmatpush1.xpose.msra.mxu0 %v1870
        %1926 = vmatprep.subr.mxu0 0.0
        %1927 = vmatpush1.xpose.msra.mxu0 %v1871
        %1928 = vmatprep.subr.mxu0 0.0
        %1929 = vmatpush1.xpose.msra.mxu0 %v1872
        %1930 = vmatprep.subr.mxu0 0.0
        %1931 = vmatpush1.xpose.msra.mxu0 %v1873
        %1932 = vmatprep.subr.mxu0 0.0
        %1933 = vmatpush1.xpose.msra.mxu0 %v1874
        %1934 = vmatprep.subr.mxu0 0.0
        %1935 = vmatpush1.xpose.msra.mxu0 %v1875
        %1936 = vmatprep.subr.mxu0 0.0
        %1937 = vmatpush1.xpose.msra.mxu0 %v1876
        %1938 = vmatprep.subr.mxu0 0.0
        %1939 = vmatpush1.xpose.msra.mxu0 %v1877
        %1940 = vmatprep.subr.mxu0 0.0
        %1941 = vmatpush1.xpose.msra.mxu0 %v1878
        %1942 = vmatprep.subr.mxu0 0.0
        %1943 = vmatpush1.xpose.msra.mxu0 %v1879
        %1944 = vmatprep.subr.mxu0 0.0
        %1945 = vmatpush1.xpose.msra.mxu0 %v1880
        %1946 = vmatprep.subr.mxu0 0.0
        %1947 = vmatpush1.xpose.msra.mxu0 %v1881
        %1948 = vmatprep.subr.mxu0 0.0
        %1949 = vmatpush1.xpose.msra.mxu0 %v1882
        %1950 = vmatprep.mubr.f32.mxu0 0.0
        %1951 = vmatmul.mubr.f32.gmra.mrb[0].mxu0 %v1883
        %v1952 = vpop.f32.mrb[0].mxu0
        %v1953 = vadd.f32 %v1885, %v1952
        %v1954 = vpop.f32.mrb[0].mxu0
        %v1955 = vadd.f32 %v1885, %v1954
        %1956 = vdwg.mxu0
        %v1957 = vxor.u32 %v1953, 2147483648
        %v1958 = vxor.u32 %v1955, 2147483648
        %v1959 = vmul.f32 %v1957, 1.442695
        %v1960 = vpow.pop %v1959
        %v1961 = vmul.f32 %v1958, 1.442695
        %v1962 = vpow.pop %v1961
        %v1963 = vadd.f32 %v1960, 1.0
        %v1964 = vadd.f32 %v1962, 1.0
        %v1965 = vrcp.pop %v1963
        %v1966 = vmul.f32 1.0, %v1965
        %v1967 = vrcp.pop %v1964
        %v1968 = vmul.f32 1.0, %v1967
        %v1971 = vcombine.low %v1966, %v1968
        %v1973 = vunpack.c.l.s4 1966171168
        %v1974 = vunpack.c.0.s8 %v1973
        %v1975 = vlaneseq
        %v1976 = vshrl.u32 %v1975, 7
        %v1977 = vsub.s32 %v1974, %v1976
        %v1978 = vrot.slane %v1971, %v1977
        %v1980 = vunpack.c.l.s4 1966171168
        %v1981 = vunpack.c.0.s8 %v1980
        %v1982 = vlaneseq
        %v1983 = vshrl.u32 %v1982, 7
        %v1984 = vsub.s32 %v1981, %v1983
        %v1985 = vrot.slane %v1978, %v1984
        %v1987 = vlaneseq
        %vm1988 = vcmp.ge.s32.totalorder %v1987, 0
        %vm1989 = vcmp.lt.s32.totalorder %v1987, 256
        %vm1990 = vmand %vm1988, %vm1989
        %1991 = vst.msk [vmem:[%s291] sm:$0x3] %vm1990, %v1985
        %s1992 = sand.u32 %s143, 1
        %s1993 = scalar_lea.sflag [#allocation5], %s1992
        %s1994 = sand.u32 %s143, 1
        %s1995 = smul.addr %s1994, 2
        %s1996 = scalar_lea.vmem [#allocation11], %s1995
        // Predicated region
        $region57: #{tpu_custom_call.1} parent=39 // pred_check
          %p1997 = pneg %p153
        $region58: #{tpu_custom_call.1} parent=39 // pred_check_branch
          %1999 = sbr.rel (%p1997) target = $region60
        $region59: #{tpu_custom_call.1} parent=39 // pred_region
          %s2000 = smul.u32 2, %s25
          %s2001 = ssub.s32 3, %s2000
          %p2002 = scmp.lt.s32.totalorder %s2001, 2
          %s2003 = scalar_select %p2002, %s2001, 2
          %s2004 = smul.u32 16, %s2003
          %s2006 = ssub.s32 32, %s2004
          %2007 = vsyncadd %s1993, %s2006
          %p2008 = scmp.ne.s32.totalorder 0, %s2004
          %s2009 = smul.addr %s2000, 16
          %s2010 = scalar_lea.hbm %s5, %s2009
          %s2011 = sshll.u32 %s2003, 4
          %s2012 = sshll.u32 %s1996, 4
          %s2013 = int_to_ptr.vmem [resolvable:$true] %s2012
          %2015 = dma.vmem_to_hbm [thread:$0]  (%p2008), %s2013, %s2011, %s2010, %s1993
        $region60: #{tpu_custom_call.1} parent=39 // pred_fallthru
          _
      $region40: #{tpu_custom_call.1} parent=5 // pred_fallthru
        _
      %p2016 = scmp.le.s32.totalorder 2, %s20
      // Predicated region
      $region61: #{tpu_custom_call.1} parent=5 // pred_check
        %p2017 = pneg %p2016
      $region62: #{tpu_custom_call.1} parent=5 // pred_check_branch
        %2019 = sbr.rel (%p2017) target = $region64
      $region63: #{tpu_custom_call.1} parent=5 // pred_region
        %s2020 = ssub.s32 %s20, 2
        // Predicated region
        $region65: #{tpu_custom_call.1} parent=63 // pred_check
          %p2021 = pneg %p159
        $region66: #{tpu_custom_call.1} parent=63 // pred_check_branch
          %2023 = sbr.rel (%p2021) target = $region68
        $region67: #{tpu_custom_call.1} parent=63 // pred_region
          %s2024 = sand.u32 %s144, 1
          %s2025 = scalar_lea.sflag [#allocation5], %s2024
          %s2026 = sand.u32 %s144, 1
          %s2027 = smul.addr %s2026, 2
          %s2028 = scalar_lea.vmem [#allocation11], %s2027
          %2029 = dma.done %s2025, 32
        $region68: #{tpu_custom_call.1} parent=63 // pred_fallthru
          _
      $region64: #{tpu_custom_call.1} parent=5 // pred_fallthru
        _
    $region6: #{tpu_custom_call.1} parent=1 // loop_footer
      %s24 = sadd.s32 1, %s20
    $region7: #{tpu_custom_call.1} parent=1 // loop_footer_branch
      %19 = sbr.rel target = $region3
    $region8: #{tpu_custom_call.1} parent=1 // loop_exit
      _
    %2030 = vsyncpa [#allocation4], 1
    %s2031 = scalar_lea.sflag [#allocation4], 1
    %2032 = vsyncpa %s2031, 1
    %2033 = vsyncpa [#allocation7], 1
    %2034 = vsyncpa [#allocation10], 1
    %2035 = vsyncpa [#allocation5], 1
    %s2036 = scalar_lea.sflag [#allocation5], 1
    %2037 = vsyncpa %s2036, 1

</llo_original>
